<compile_context>
chip_gen: v7x
topology: tpu7x:2x2x1
jax: 0.10.0
libtpu: 0.0.40
codegen_flags: <defaults>
</compile_context>

<pallas_src>
import jax
import jax.numpy as jnp
import numpy as np
from jax import lax
from jax.experimental import pallas as pl
from jax.experimental.pallas import tpu as pltpu

KSIZE = 3  # kernel_size of both convs (padding=1 in the module)


def _banded_weight(w, W):
    """Torch conv weight (COUT, CIN, KH, KW) -> (KH, W*CIN, W*COUT) block-banded
    matrices over the (W, C) interleaved axis.  Folds the kw taps and the
    W-direction zero padding (padding=1)."""
    COUT, CIN, KH, KW = w.shape
    band = np.zeros((KH, W * CIN, W * COUT), np.float32)
    for kh in range(KH):
        for wo in range(W):
            for kw in range(KW):
                wi = wo + kw - 1
                if 0 <= wi < W:
                    band[kh, wi * CIN:(wi + 1) * CIN,
                         wo * COUT:(wo + 1) * COUT] = w[:, :, kh, kw].T
    return band


def _make_motion_kernel(H, W, CIN, COUT):
    HH, WH = H // 2, W // 2
    WC_IN, WC_OUT = W * CIN, W * COUT

    def kernel(x_ref, mask_ref, w1_ref, b1_ref, w2_ref, b2_ref,
               e_ref, ph_ref, pw_ref, out_ref, y1_scr):
        # Zero only the two halo rows of the conv2 padding scratch; rows 1..H
        # are fully rewritten below, so nothing stale survives across steps.
        zrow = jnp.zeros((1, WC_OUT), jnp.float32)
        y1_scr[pl.ds(0, 1), :] = zrow
        y1_scr[pl.ds(H + 1, 1), :] = zrow

        # ---- conv1 (3x3, pad=1) + bias + tanh: 3 banded whole-image matmuls
        acc1 = jnp.dot(x_ref[0, pl.ds(0, H), :], w1_ref[0],
                       preferred_element_type=jnp.float32)
        for kh in range(1, KSIZE):
            acc1 = acc1 + jnp.dot(x_ref[0, pl.ds(kh, H), :], w1_ref[kh],
                                  preferred_element_type=jnp.float32)
        y1_scr[pl.ds(1, H), :] = jnp.tanh(acc1 + b1_ref[...])

        # ---- conv2 (3x3, pad=1) + bias: 3 banded whole-image matmuls
        acc2 = jnp.dot(y1_scr[pl.ds(0, H), :], w2_ref[0],
                       preferred_element_type=jnp.float32)
        for kh in range(1, KSIZE):
            acc2 = acc2 + jnp.dot(y1_scr[pl.ds(kh, H), :], w2_ref[kh],
                                  preferred_element_type=jnp.float32)
        acc2 = acc2 + b2_ref[...]

        # ---- mask (per-pixel, broadcast over channels via 0/1 matmul) + tanh
        m_wide = jnp.dot(mask_ref[0], e_ref[...],
                         preferred_element_type=jnp.float32)   # (H, W*COUT)
        t = jnp.tanh(acc2 * m_wide)

        # ---- 2x2 avg pool: row-pool @ t @ channel-interleaved column-pool
        pooled = jnp.dot(jnp.dot(ph_ref[...], t,
                                 preferred_element_type=jnp.float32),
                         pw_ref[...], preferred_element_type=jnp.float32)
        out_ref[0, :, :] = pooled.astype(out_ref.dtype)

    return kernel


def motion_block_2d(x_nchw, mask_nchw, w1, b1, w2, b2):
    """x_nchw: (N,Cin,H,W), mask_nchw: (N,1,H,W); torch-layout weights/biases."""
    N, CIN, H, W = x_nchw.shape
    COUT = w1.shape[0]
    HH, WH = H // 2, W // 2
    WC_IN, WC_OUT = W * CIN, W * COUT

    # NCHW -> lane-dense (N, H, W*CIN), zero-pad H by 1 row each side (conv pad).
    x_l = jnp.transpose(x_nchw, (0, 2, 3, 1)).reshape(N, H, WC_IN)
    x_pad = jnp.pad(x_l.astype(jnp.float32), ((0, 0), (1, 1), (0, 0)))

    # Mask stays un-broadcast: (N, H, W).
    mask = mask_nchw.reshape(N, H, W).astype(jnp.float32)

    # Conv weights -> per-kh block-banded matrices; biases tiled along W.
    band1 = jnp.asarray(_banded_weight(np.asarray(w1, np.float32), W))
    band2 = jnp.asarray(_banded_weight(np.asarray(w2, np.float32), W))
    b1_w = jnp.asarray(np.tile(np.asarray(b1, np.float32), W)).reshape(1, WC_OUT)
    b2_w = jnp.asarray(np.tile(np.asarray(b2, np.float32), W)).reshape(1, WC_OUT)

    # Mask channel-expansion matrix: (W, W*COUT), E[w, w*COUT+co] = 1.
    e_np = np.zeros((W, WC_OUT), np.float32)
    for wi in range(W):
        e_np[wi, wi * COUT:(wi + 1) * COUT] = 1.0

    # Pool matrices: rows (HH, H) carry the 0.25, columns (W*COUT, WH*COUT) are 0/1.
    ph_np = np.zeros((HH, H), np.float32)
    for i in range(HH):
        ph_np[i, 2 * i] = 0.25
        ph_np[i, 2 * i + 1] = 0.25
    pw_np = np.zeros((WC_OUT, WH * COUT), np.float32)
    eye = np.eye(COUT, dtype=np.float32)
    for w2i in range(WH):
        for dw in range(2):
            src = (2 * w2i + dw) * COUT
            pw_np[src:src + COUT, w2i * COUT:(w2i + 1) * COUT] += eye

    kernel = _make_motion_kernel(H, W, CIN, COUT)

    grid_spec = pltpu.PrefetchScalarGridSpec(
        num_scalar_prefetch=0,
        grid=(N,),
        in_specs=[
            pl.BlockSpec((1, H + 2, WC_IN), lambda n: (n, 0, 0)),       # x
            pl.BlockSpec((1, H, W), lambda n: (n, 0, 0)),               # mask
            pl.BlockSpec((KSIZE, WC_IN, WC_OUT), lambda n: (0, 0, 0)),  # band1
            pl.BlockSpec((1, WC_OUT), lambda n: (0, 0)),                # b1
            pl.BlockSpec((KSIZE, WC_OUT, WC_OUT), lambda n: (0, 0, 0)), # band2
            pl.BlockSpec((1, WC_OUT), lambda n: (0, 0)),                # b2
            pl.BlockSpec((W, WC_OUT), lambda n: (0, 0)),                # E
            pl.BlockSpec((HH, H), lambda n: (0, 0)),                    # P_h
            pl.BlockSpec((WC_OUT, WH * COUT), lambda n: (0, 0)),        # P_w
        ],
        out_specs=pl.BlockSpec((1, HH, WH * COUT), lambda n: (n, 0, 0)),
        scratch_shapes=[pltpu.VMEM((H + 2, WC_OUT), jnp.float32)],
    )

    out = pl.pallas_call(
        kernel,
        out_shape=jax.ShapeDtypeStruct((N, HH, WH * COUT), jnp.float32),
        grid_spec=grid_spec,
        compiler_params=pltpu.CompilerParams(
            dimension_semantics=("parallel",)),
    )(x_pad, mask, band1, b1_w, band2, b2_w,
      jnp.asarray(e_np), jnp.asarray(ph_np), jnp.asarray(pw_np))

    # (N, HH, WH*COUT) -> NCHW
    return jnp.transpose(out.reshape(N, HH, WH, COUT), (0, 3, 1, 2))


def _reference(x, mask, w1, b1, w2, b2):
    """Pure-JAX reference of the module forward (eval mode)."""
    dn = ("NCHW", "OIHW", "NCHW")
    y = lax.conv_general_dilated(x, w1, (1, 1), ((1, 1), (1, 1)),
                                 dimension_numbers=dn) + b1[None, :, None, None]
    y = jnp.tanh(y)
    y = lax.conv_general_dilated(y, w2, (1, 1), ((1, 1), (1, 1)),
                                 dimension_numbers=dn) + b2[None, :, None, None]
    y = y * mask
    y = jnp.tanh(y)
    N, C, H, W = y.shape
    return y.reshape(N, C, H // 2, 2, W // 2, 2).mean(axis=(3, 5))


if __name__ == "__main__":
    N, CIN, COUT, H, W = 2, 4, 8, 16, 16
    key = jax.random.PRNGKey(0)
    k1, k2, k3, k4, k5, k6 = jax.random.split(key, 6)

    x = jax.random.normal(k1, (N, CIN, H, W), jnp.float32)
    mask = jax.nn.sigmoid(jax.random.normal(k2, (N, 1, H, W), jnp.float32))
    w1 = jax.random.normal(k3, (COUT, CIN, KSIZE, KSIZE), jnp.float32) * 0.2
    b1 = jax.random.normal(k4, (COUT,), jnp.float32) * 0.1
    w2 = jax.random.normal(k5, (COUT, COUT, KSIZE, KSIZE), jnp.float32) * 0.2
    b2 = jax.random.normal(k6, (COUT,), jnp.float32) * 0.1

    out = motion_block_2d(x, mask, w1, b1, w2, b2)
    out = jax.block_until_ready(out)

    ref = _reference(x, mask, w1, b1, w2, b2)
    assert out.shape == (N, COUT, H // 2, W // 2), out.shape
    np.testing.assert_allclose(np.asarray(out), np.asarray(ref),
                               atol=1e-4, rtol=1e-4)
    print("KERNEL_OK")
</pallas_src>

<mosaic_0001>
module attributes {stable_mosaic.version = 11 : i64} {
  func.func @kernel(%arg0: i32, %arg1: memref<1x18x64xf32, #tpu.memory_space<vmem>>, %arg2: memref<1x16x16xf32, #tpu.memory_space<vmem>>, %arg3: memref<3x64x128xf32, #tpu.memory_space<vmem>>, %arg4: memref<1x128xf32, #tpu.memory_space<vmem>>, %arg5: memref<3x128x128xf32, #tpu.memory_space<vmem>>, %arg6: memref<1x128xf32, #tpu.memory_space<vmem>>, %arg7: memref<16x128xf32, #tpu.memory_space<vmem>>, %arg8: memref<8x16xf32, #tpu.memory_space<vmem>>, %arg9: memref<128x64xf32, #tpu.memory_space<vmem>>, %arg10: memref<1x8x64xf32, #tpu.memory_space<vmem>>, %arg11: memref<18x128xf32, #tpu.memory_space<vmem>>) attributes {dimension_semantics = [#tpu.dimension_semantics<parallel>], iteration_bounds = array<i64: 2>, scalar_prefetch = 0 : i64, scratch_operands = 1 : i64, tpu.core_type = #tpu.core_type<tc>, window_params = [{transform_indices = @transform_0, window_bounds = array<i64: 1, 18, 64>}, {transform_indices = @transform_1, window_bounds = array<i64: 1, 16, 16>}, {pipeline_mode = #tpu.pipeline_mode<synchronous>, transform_indices = @transform_2, window_bounds = array<i64: 3, 64, 128>}, {pipeline_mode = #tpu.pipeline_mode<synchronous>, transform_indices = @transform_3, window_bounds = array<i64: 1, 128>}, {pipeline_mode = #tpu.pipeline_mode<synchronous>, transform_indices = @transform_4, window_bounds = array<i64: 3, 128, 128>}, {pipeline_mode = #tpu.pipeline_mode<synchronous>, transform_indices = @transform_5, window_bounds = array<i64: 1, 128>}, {pipeline_mode = #tpu.pipeline_mode<synchronous>, transform_indices = @transform_6, window_bounds = array<i64: 16, 128>}, {pipeline_mode = #tpu.pipeline_mode<synchronous>, transform_indices = @transform_7, window_bounds = array<i64: 8, 16>}, {pipeline_mode = #tpu.pipeline_mode<synchronous>, transform_indices = @transform_8, window_bounds = array<i64: 128, 64>}, {transform_indices = @transform_9, window_bounds = array<i64: 1, 8, 64>}]} {
    %cst = arith.constant 0.000000e+00 : f32
    %0 = vector.broadcast %cst : f32 to vector<1x128xf32>
    %c0 = arith.constant 0 : index
    %c0_0 = arith.constant 0 : index
    %1 = vector.load %arg11[%c0, %c0_0] : memref<18x128xf32, #tpu.memory_space<vmem>>, vector<1x128xf32>
    tpu.vector_store %arg11[%c0, %c0_0], %0 {strides = array<i32>} : memref<18x128xf32, #tpu.memory_space<vmem>>, vector<1x128xf32>,
    %c17 = arith.constant 17 : index
    %c0_1 = arith.constant 0 : index
    %2 = vector.load %arg11[%c17, %c0_1] : memref<18x128xf32, #tpu.memory_space<vmem>>, vector<1x128xf32>
    tpu.vector_store %arg11[%c17, %c0_1], %0 {strides = array<i32>} : memref<18x128xf32, #tpu.memory_space<vmem>>, vector<1x128xf32>,
    %c0_2 = arith.constant 0 : index
    %c0_3 = arith.constant 0 : index
    %c0_4 = arith.constant 0 : index
    %3 = vector.load %arg1[%c0_2, %c0_3, %c0_4] : memref<1x18x64xf32, #tpu.memory_space<vmem>>, vector<1x16x64xf32>
    %4 = vector.shape_cast %3 : vector<1x16x64xf32> to vector<16x64xf32>
    %c0_5 = arith.constant 0 : index
    %c0_6 = arith.constant 0 : index
    %c0_7 = arith.constant 0 : index
    %5 = vector.load %arg3[%c0_5, %c0_6, %c0_7] : memref<3x64x128xf32, #tpu.memory_space<vmem>>, vector<1x64x128xf32>
    %6 = vector.shape_cast %5 : vector<1x64x128xf32> to vector<64x128xf32>
    %cst_8 = arith.constant dense<0.000000e+00> : vector<16x128xf32>
    %7 = tpu.matmul %4, %6, %cst_8 {dimension_numbers = #tpu.dot_dimension_numbers<[1], [0], [0], [1], [0, 0, 1, 1], [], []>} : vector<16x64xf32>, vector<64x128xf32>, vector<16x128xf32> -> vector<16x128xf32>
    %c0_9 = arith.constant 0 : index
    %c1 = arith.constant 1 : index
    %c0_10 = arith.constant 0 : index
    %8 = vector.load %arg1[%c0_9, %c1, %c0_10] : memref<1x18x64xf32, #tpu.memory_space<vmem>>, vector<1x16x64xf32>
    %9 = vector.shape_cast %8 : vector<1x16x64xf32> to vector<16x64xf32>
    %c1_11 = arith.constant 1 : index
    %c0_12 = arith.constant 0 : index
    %c0_13 = arith.constant 0 : index
    %10 = vector.load %arg3[%c1_11, %c0_12, %c0_13] : memref<3x64x128xf32, #tpu.memory_space<vmem>>, vector<1x64x128xf32>
    %11 = vector.shape_cast %10 : vector<1x64x128xf32> to vector<64x128xf32>
    %cst_14 = arith.constant dense<0.000000e+00> : vector<16x128xf32>
    %12 = tpu.matmul %9, %11, %cst_14 {dimension_numbers = #tpu.dot_dimension_numbers<[1], [0], [0], [1], [0, 0, 1, 1], [], []>} : vector<16x64xf32>, vector<64x128xf32>, vector<16x128xf32> -> vector<16x128xf32>
    %13 = arith.addf %7, %12 : vector<16x128xf32>
    %c0_15 = arith.constant 0 : index
    %c2 = arith.constant 2 : index
    %c0_16 = arith.constant 0 : index
    %14 = vector.load %arg1[%c0_15, %c2, %c0_16] : memref<1x18x64xf32, #tpu.memory_space<vmem>>, vector<1x16x64xf32>
    %15 = vector.shape_cast %14 : vector<1x16x64xf32> to vector<16x64xf32>
    %c2_17 = arith.constant 2 : index
    %c0_18 = arith.constant 0 : index
    %c0_19 = arith.constant 0 : index
    %16 = vector.load %arg3[%c2_17, %c0_18, %c0_19] : memref<3x64x128xf32, #tpu.memory_space<vmem>>, vector<1x64x128xf32>
    %17 = vector.shape_cast %16 : vector<1x64x128xf32> to vector<64x128xf32>
    %cst_20 = arith.constant dense<0.000000e+00> : vector<16x128xf32>
    %18 = tpu.matmul %15, %17, %cst_20 {dimension_numbers = #tpu.dot_dimension_numbers<[1], [0], [0], [1], [0, 0, 1, 1], [], []>} : vector<16x64xf32>, vector<64x128xf32>, vector<16x128xf32> -> vector<16x128xf32>
    %19 = arith.addf %13, %18 : vector<16x128xf32>
    %c0_21 = arith.constant 0 : index
    %c0_22 = arith.constant 0 : index
    %20 = vector.load %arg4[%c0_21, %c0_22] : memref<1x128xf32, #tpu.memory_space<vmem>>, vector<1x128xf32>
    %21 = vector.broadcast %20 : vector<1x128xf32> to vector<16x128xf32>
    %22 = arith.addf %19, %21 : vector<16x128xf32>
    %23 = math.tanh %22 : vector<16x128xf32>
    %c1_23 = arith.constant 1 : index
    %c0_24 = arith.constant 0 : index
    %24 = vector.load %arg11[%c1_23, %c0_24] : memref<18x128xf32, #tpu.memory_space<vmem>>, vector<16x128xf32>
    tpu.vector_store %arg11[%c1_23, %c0_24], %23 {strides = array<i32>} : memref<18x128xf32, #tpu.memory_space<vmem>>, vector<16x128xf32>,
    %c0_25 = arith.constant 0 : index
    %c0_26 = arith.constant 0 : index
    %25 = vector.load %arg11[%c0_25, %c0_26] : memref<18x128xf32, #tpu.memory_space<vmem>>, vector<16x128xf32>
    %c0_27 = arith.constant 0 : index
    %c0_28 = arith.constant 0 : index
    %c0_29 = arith.constant 0 : index
    %26 = vector.load %arg5[%c0_27, %c0_28, %c0_29] : memref<3x128x128xf32, #tpu.memory_space<vmem>>, vector<1x128x128xf32>
    %27 = vector.shape_cast %26 : vector<1x128x128xf32> to vector<128x128xf32>
    %cst_30 = arith.constant dense<0.000000e+00> : vector<16x128xf32>
    %28 = tpu.matmul %25, %27, %cst_30 {dimension_numbers = #tpu.dot_dimension_numbers<[1], [0], [0], [1], [0, 0, 1, 1], [], []>} : vector<16x128xf32>, vector<128x128xf32>, vector<16x128xf32> -> vector<16x128xf32>
    %c1_31 = arith.constant 1 : index
    %c0_32 = arith.constant 0 : index
    %29 = vector.load %arg11[%c1_31, %c0_32] : memref<18x128xf32, #tpu.memory_space<vmem>>, vector<16x128xf32>
    %c1_33 = arith.constant 1 : index
    %c0_34 = arith.constant 0 : index
    %c0_35 = arith.constant 0 : index
    %30 = vector.load %arg5[%c1_33, %c0_34, %c0_35] : memref<3x128x128xf32, #tpu.memory_space<vmem>>, vector<1x128x128xf32>
    %31 = vector.shape_cast %30 : vector<1x128x128xf32> to vector<128x128xf32>
    %cst_36 = arith.constant dense<0.000000e+00> : vector<16x128xf32>
    %32 = tpu.matmul %29, %31, %cst_36 {dimension_numbers = #tpu.dot_dimension_numbers<[1], [0], [0], [1], [0, 0, 1, 1], [], []>} : vector<16x128xf32>, vector<128x128xf32>, vector<16x128xf32> -> vector<16x128xf32>
    %33 = arith.addf %28, %32 : vector<16x128xf32>
    %c2_37 = arith.constant 2 : index
    %c0_38 = arith.constant 0 : index
    %34 = vector.load %arg11[%c2_37, %c0_38] : memref<18x128xf32, #tpu.memory_space<vmem>>, vector<16x128xf32>
    %c2_39 = arith.constant 2 : index
    %c0_40 = arith.constant 0 : index
    %c0_41 = arith.constant 0 : index
    %35 = vector.load %arg5[%c2_39, %c0_40, %c0_41] : memref<3x128x128xf32, #tpu.memory_space<vmem>>, vector<1x128x128xf32>
    %36 = vector.shape_cast %35 : vector<1x128x128xf32> to vector<128x128xf32>
    %cst_42 = arith.constant dense<0.000000e+00> : vector<16x128xf32>
    %37 = tpu.matmul %34, %36, %cst_42 {dimension_numbers = #tpu.dot_dimension_numbers<[1], [0], [0], [1], [0, 0, 1, 1], [], []>} : vector<16x128xf32>, vector<128x128xf32>, vector<16x128xf32> -> vector<16x128xf32>
    %38 = arith.addf %33, %37 : vector<16x128xf32>
    %c0_43 = arith.constant 0 : index
    %c0_44 = arith.constant 0 : index
    %39 = vector.load %arg6[%c0_43, %c0_44] : memref<1x128xf32, #tpu.memory_space<vmem>>, vector<1x128xf32>
    %40 = vector.broadcast %39 : vector<1x128xf32> to vector<16x128xf32>
    %41 = arith.addf %38, %40 : vector<16x128xf32>
    %c0_45 = arith.constant 0 : index
    %c0_46 = arith.constant 0 : index
    %c0_47 = arith.constant 0 : index
    %42 = vector.load %arg2[%c0_45, %c0_46, %c0_47] : memref<1x16x16xf32, #tpu.memory_space<vmem>>, vector<1x16x16xf32>
    %43 = vector.shape_cast %42 : vector<1x16x16xf32> to vector<16x16xf32>
    %c0_48 = arith.constant 0 : index
    %c0_49 = arith.constant 0 : index
    %44 = vector.load %arg7[%c0_48, %c0_49] : memref<16x128xf32, #tpu.memory_space<vmem>>, vector<16x128xf32>
    %cst_50 = arith.constant dense<0.000000e+00> : vector<16x128xf32>
    %45 = tpu.matmul %43, %44, %cst_50 {dimension_numbers = #tpu.dot_dimension_numbers<[1], [0], [0], [1], [0, 0, 1, 1], [], []>} : vector<16x16xf32>, vector<16x128xf32>, vector<16x128xf32> -> vector<16x128xf32>
    %46 = arith.mulf %41, %45 : vector<16x128xf32>
    %47 = math.tanh %46 : vector<16x128xf32>
    %c0_51 = arith.constant 0 : index
    %c0_52 = arith.constant 0 : index
    %48 = vector.load %arg8[%c0_51, %c0_52] : memref<8x16xf32, #tpu.memory_space<vmem>>, vector<8x16xf32>
    %cst_53 = arith.constant dense<0.000000e+00> : vector<8x128xf32>
    %49 = tpu.matmul %48, %47, %cst_53 {dimension_numbers = #tpu.dot_dimension_numbers<[1], [0], [0], [1], [0, 0, 1, 1], [], []>} : vector<8x16xf32>, vector<16x128xf32>, vector<8x128xf32> -> vector<8x128xf32>
    %c0_54 = arith.constant 0 : index
    %c0_55 = arith.constant 0 : index
    %50 = vector.load %arg9[%c0_54, %c0_55] : memref<128x64xf32, #tpu.memory_space<vmem>>, vector<128x64xf32>
    %cst_56 = arith.constant dense<0.000000e+00> : vector<8x64xf32>
    %51 = tpu.matmul %49, %50, %cst_56 {dimension_numbers = #tpu.dot_dimension_numbers<[1], [0], [0], [1], [0, 0, 1, 1], [], []>} : vector<8x128xf32>, vector<128x64xf32>, vector<8x64xf32> -> vector<8x64xf32>
    %c0_57 = arith.constant 0 : index
    %c0_58 = arith.constant 0 : index
    %c0_59 = arith.constant 0 : index
    %52 = vector.load %arg10[%c0_57, %c0_58, %c0_59] : memref<1x8x64xf32, #tpu.memory_space<vmem>>, vector<1x8x64xf32>
    %53 = vector.shape_cast %52 : vector<1x8x64xf32> to vector<8x64xf32>
    %54 = vector.shape_cast %51 : vector<8x64xf32> to vector<1x8x64xf32>
    tpu.vector_store %arg10[%c0_57, %c0_58, %c0_59], %54 {strides = array<i32>} : memref<1x8x64xf32, #tpu.memory_space<vmem>>, vector<1x8x64xf32>,
    return
  }
  func.func @transform_0(%arg0: i32) -> (i32, i32, i32) {
    %c0_i32 = arith.constant 0 : i32
    %c0_i32_0 = arith.constant 0 : i32
    %c0_i32_1 = arith.constant 0 : i32
    return %arg0, %c0_i32, %c0_i32_0 : i32, i32, i32
  }
  func.func @transform_1(%arg0: i32) -> (i32, i32, i32) {
    %c0_i32 = arith.constant 0 : i32
    %c0_i32_0 = arith.constant 0 : i32
    %c0_i32_1 = arith.constant 0 : i32
    return %arg0, %c0_i32, %c0_i32_0 : i32, i32, i32
  }
  func.func @transform_2(%arg0: i32) -> (i32, i32, i32) {
    %c0_i32 = arith.constant 0 : i32
    %c0_i32_0 = arith.constant 0 : i32
    %c0_i32_1 = arith.constant 0 : i32
    %c0_i32_2 = arith.constant 0 : i32
    return %c0_i32, %c0_i32_0, %c0_i32_1 : i32, i32, i32
  }
  func.func @transform_3(%arg0: i32) -> (i32, i32) {
    %c0_i32 = arith.constant 0 : i32
    %c0_i32_0 = arith.constant 0 : i32
    %c0_i32_1 = arith.constant 0 : i32
    return %c0_i32, %c0_i32_0 : i32, i32
  }
  func.func @transform_4(%arg0: i32) -> (i32, i32, i32) {
    %c0_i32 = arith.constant 0 : i32
    %c0_i32_0 = arith.constant 0 : i32
    %c0_i32_1 = arith.constant 0 : i32
    %c0_i32_2 = arith.constant 0 : i32
    return %c0_i32, %c0_i32_0, %c0_i32_1 : i32, i32, i32
  }
  func.func @transform_5(%arg0: i32) -> (i32, i32) {
    %c0_i32 = arith.constant 0 : i32
    %c0_i32_0 = arith.constant 0 : i32
    %c0_i32_1 = arith.constant 0 : i32
    return %c0_i32, %c0_i32_0 : i32, i32
  }
  func.func @transform_6(%arg0: i32) -> (i32, i32) {
    %c0_i32 = arith.constant 0 : i32
    %c0_i32_0 = arith.constant 0 : i32
    %c0_i32_1 = arith.constant 0 : i32
    return %c0_i32, %c0_i32_0 : i32, i32
  }
  func.func @transform_7(%arg0: i32) -> (i32, i32) {
    %c0_i32 = arith.constant 0 : i32
    %c0_i32_0 = arith.constant 0 : i32
    %c0_i32_1 = arith.constant 0 : i32
    return %c0_i32, %c0_i32_0 : i32, i32
  }
  func.func @transform_8(%arg0: i32) -> (i32, i32) {
    %c0_i32 = arith.constant 0 : i32
    %c0_i32_0 = arith.constant 0 : i32
    %c0_i32_1 = arith.constant 0 : i32
    return %c0_i32, %c0_i32_0 : i32, i32
  }
  func.func @transform_9(%arg0: i32) -> (i32, i32, i32) {
    %c0_i32 = arith.constant 0 : i32
    %c0_i32_0 = arith.constant 0 : i32
    %c0_i32_1 = arith.constant 0 : i32
    return %arg0, %c0_i32, %c0_i32_0 : i32, i32, i32
  }
}

</mosaic_0001>

<llo_original>
// kernel: tpu_custom_call.1
$region0: #{tpu_custom_call.1}
  #allocation0 [shape = 'u32[]', space=smem, size = 0x4, offset = 0x4, fixed_abs, tag = 'smem constant byte address 0x4 - core index']
  #allocation1 [shape = 'u32[144,128]{1,0:T(1,128)}', space=vmem, size = 0x12000, scoped, tag = 'internal scratch']
  #allocation2 [shape = 'f32[18,128]{1,0:T(8,128)}', space=vmem, size = 0x3000, scoped, tag = 'scratch operand']
  %s0 = inlined_call_operand.vmem [shape: f32[2,18,64], index: 0, kind: input, shape index: {}]
  %s1 = inlined_call_operand.vmem [shape: f32[2,16,16], index: 1, kind: input, shape index: {}]
  %s2 = inlined_call_operand.vmem [shape: f32[3,64,128], index: 2, kind: input, shape index: {}]
  %s3 = inlined_call_operand.vmem [shape: f32[1,128], index: 3, kind: input, shape index: {}]
  %s4 = inlined_call_operand.hbm [shape: f32[3,128,128], index: 4, kind: input, shape index: {}]
  %s5 = inlined_call_operand.vmem [shape: f32[1,128], index: 5, kind: input, shape index: {}]
  %s6 = inlined_call_operand.vmem [shape: f32[16,128], index: 6, kind: input, shape index: {}]
  %s7 = inlined_call_operand.hbm [shape: f32[8,16], index: 7, kind: input, shape index: {}]
  %s8 = inlined_call_operand.vmem [shape: f32[128,64], index: 8, kind: input, shape index: {}]
  %s9 = inlined_call_operand.hbm [shape: f32[2,8,64], index: 9, kind: output, shape index: {}]
  %s10 = sld [smem:[#allocation0]]
  $region77: #{tpu_custom_call.1} parent=0
    _
  %s12 = ssub.s32 1, %s10
  %s13 = scalar_select 0, %s12, %s10
  $region1: #{tpu_custom_call.1} parent=0
    #allocation3 [shape = 'u8[196608]{0}', space=vmem, size = 0x30000, scoped, tag = 'input window, operand 4, single buffered']
    #allocation4 [shape = 's32[2]{0}', space=sflag, size = 0x8, scoped, tag = 'scoped memory for tpu_custom_call.1']
    #allocation5 [shape = 's32[2]{0}', space=sflag, size = 0x8, scoped, tag = 'scoped memory for tpu_custom_call.1']
    #allocation6 [shape = 'u8[4096]{0}', space=vmem, size = 0x1000, scoped, tag = 'input window, operand 7, single buffered']
    #allocation7 [shape = 's32[1]{0}', space=sflag, size = 0x4, scoped, tag = 'scoped memory for tpu_custom_call.1']
    #allocation8 [shape = 'u8[8192]{0}', space=vmem, size = 0x2000, scoped, tag = 'output window, operand 0']
    %14 = vsyncpa [#allocation4], 0
    %15 = vsyncpa [#allocation7], 0
    %16 = vsyncpa [#allocation5], 0
    %s17 = scalar_lea.sflag [#allocation5], 1
    %18 = vsyncpa %s17, 0
    loop: start=0, step=1, limit=4
    $region2: #{tpu_custom_call.1} parent=1 // loop_pre_header
      _
    $region3: #{tpu_custom_call.1} parent=1 // loop_header
      %s20 = sphi 0, %s24
      %p21 = scmp.ge.s32.totalorder %s20, 4
      %s30 = sphi 0, %s32
      %s33 = sphi 0, %s30
      %s34 = sphi 0, %s33
      %s50 = sphi 0, %s34
      %s56 = sphi 0, %s58
      %s59 = sphi 0, %s56
      %s60 = sphi 0, %s59
      %s76 = sphi 0, %s60
      %s80 = sphi 0, %s80
      %s82 = sphi 0, %s80
      %s83 = sphi 0, %s82
      %s97 = sphi 0, %s83
      %s101 = sphi 0, %s101
      %s103 = sphi 0, %s101
      %s104 = sphi 0, %s103
      %s118 = sphi 0, %s104
      %s122 = sphi 0, %s122
      %s124 = sphi 0, %s122
      %s125 = sphi 0, %s124
      %s139 = sphi 0, %s125
      %s143 = sphi 0, %s143
      %s145 = sphi 0, %s143
      %s146 = sphi 0, %s145
      %s160 = sphi 0, %s146
      %s164 = sphi 0, %s164
      %s166 = sphi 0, %s164
      %s167 = sphi 0, %s166
      %s181 = sphi 0, %s167
      %s185 = sphi 0, %s185
      %s187 = sphi 0, %s185
      %s188 = sphi 0, %s187
      %s202 = sphi 0, %s188
      %s206 = sphi 0, %s206
      %s208 = sphi 0, %s206
      %s209 = sphi 0, %s208
      %s223 = sphi 0, %s209
      %s229 = sphi 0, %s231
      %s232 = sphi 0, %s229
      %s233 = sphi 0, %s232
      %s249 = sphi 0, %s233
    $region4: #{tpu_custom_call.1} parent=1 // loop_header_branch
      %23 = sbr.rel (%p21) target = $region8
    $region5: #{tpu_custom_call.1} parent=1 // loop_body
      %s25 = ssub.s32 %s20, 1
      %s26 = ssub.s32 %s20, 2
      %s27 = sadd.s32 %s20, 1
      %s28 = ssub.s32 %s20, %s27
      %p29 = scmp.eq.s32.totalorder %s28, 0
      %s31 = sadd.s32 %s30, 1
      %s32 = scalar_select %p29, %s30, %s31
      %p35 = pneg %p29
      %p36 = scmp.eq.s32.totalorder %s20, 1
      %p37 = por %p35, %p36
      %p38 = scmp.ne.s32.totalorder %s30, %s33
      %p39 = scmp.eq.s32.totalorder %s20, 0
      %p40 = por %p38, %p39
      %p41 = scmp.ne.s32.totalorder %s30, %s33
      %p42 = scmp.eq.s32.totalorder %s25, 1
      %p43 = por %p41, %p42
      %p44 = scmp.ne.s32.totalorder %s33, %s34
      %p45 = scmp.eq.s32.totalorder %s25, 0
      %p46 = por %p44, %p45
      %p47 = scmp.ne.s32.totalorder %s33, %s34
      %p48 = scmp.eq.s32.totalorder %s26, 1
      %p49 = por %p47, %p48
      %p51 = scmp.ne.s32.totalorder %s34, %s50
      %p52 = scmp.eq.s32.totalorder %s26, 0
      %p53 = por %p51, %p52
      %s54 = ssub.s32 %s20, %s27
      %p55 = scmp.eq.s32.totalorder %s54, 0
      %s57 = sadd.s32 %s56, 1
      %s58 = scalar_select %p55, %s56, %s57
      %p61 = pneg %p55
      %p62 = scmp.eq.s32.totalorder %s20, 1
      %p63 = por %p61, %p62
      %p64 = scmp.ne.s32.totalorder %s56, %s59
      %p65 = scmp.eq.s32.totalorder %s20, 0
      %p66 = por %p64, %p65
      %p67 = scmp.ne.s32.totalorder %s56, %s59
      %p68 = scmp.eq.s32.totalorder %s25, 1
      %p69 = por %p67, %p68
      %p70 = scmp.ne.s32.totalorder %s59, %s60
      %p71 = scmp.eq.s32.totalorder %s25, 0
      %p72 = por %p70, %p71
      %p73 = scmp.ne.s32.totalorder %s59, %s60
      %p74 = scmp.eq.s32.totalorder %s26, 1
      %p75 = por %p73, %p74
      %p77 = scmp.ne.s32.totalorder %s60, %s76
      %p78 = scmp.eq.s32.totalorder %s26, 0
      %p79 = por %p77, %p78
      %s81 = sadd.s32 %s80, 1
      %p84 = scmp.eq.s32.totalorder %s20, 1
      %p85 = scmp.ne.s32.totalorder %s80, %s82
      %p86 = scmp.eq.s32.totalorder %s20, 0
      %p87 = por %p85, %p86
      %p88 = scmp.ne.s32.totalorder %s80, %s82
      %p89 = scmp.eq.s32.totalorder %s25, 1
      %p90 = por %p88, %p89
      %p91 = scmp.ne.s32.totalorder %s82, %s83
      %p92 = scmp.eq.s32.totalorder %s25, 0
      %p93 = por %p91, %p92
      %p94 = scmp.ne.s32.totalorder %s82, %s83
      %p95 = scmp.eq.s32.totalorder %s26, 1
      %p96 = por %p94, %p95
      %p98 = scmp.ne.s32.totalorder %s83, %s97
      %p99 = scmp.eq.s32.totalorder %s26, 0
      %p100 = por %p98, %p99
      %s102 = sadd.s32 %s101, 1
      %p105 = scmp.eq.s32.totalorder %s20, 1
      %p106 = scmp.ne.s32.totalorder %s101, %s103
      %p107 = scmp.eq.s32.totalorder %s20, 0
      %p108 = por %p106, %p107
      %p109 = scmp.ne.s32.totalorder %s101, %s103
      %p110 = scmp.eq.s32.totalorder %s25, 1
      %p111 = por %p109, %p110
      %p112 = scmp.ne.s32.totalorder %s103, %s104
      %p113 = scmp.eq.s32.totalorder %s25, 0
      %p114 = por %p112, %p113
      %p115 = scmp.ne.s32.totalorder %s103, %s104
      %p116 = scmp.eq.s32.totalorder %s26, 1
      %p117 = por %p115, %p116
      %p119 = scmp.ne.s32.totalorder %s104, %s118
      %p120 = scmp.eq.s32.totalorder %s26, 0
      %p121 = por %p119, %p120
      %s123 = sadd.s32 %s122, 1
      %p126 = scmp.eq.s32.totalorder %s20, 1
      %p127 = scmp.ne.s32.totalorder %s122, %s124
      %p128 = scmp.eq.s32.totalorder %s20, 0
      %p129 = por %p127, %p128
      %p130 = scmp.ne.s32.totalorder %s122, %s124
      %p131 = scmp.eq.s32.totalorder %s25, 1
      %p132 = por %p130, %p131
      %p133 = scmp.ne.s32.totalorder %s124, %s125
      %p134 = scmp.eq.s32.totalorder %s25, 0
      %p135 = por %p133, %p134
      %p136 = scmp.ne.s32.totalorder %s124, %s125
      %p137 = scmp.eq.s32.totalorder %s26, 1
      %p138 = por %p136, %p137
      %p140 = scmp.ne.s32.totalorder %s125, %s139
      %p141 = scmp.eq.s32.totalorder %s26, 0
      %p142 = por %p140, %p141
      %s144 = sadd.s32 %s143, 1
      %p147 = scmp.eq.s32.totalorder %s20, 1
      %p148 = scmp.ne.s32.totalorder %s143, %s145
      %p149 = scmp.eq.s32.totalorder %s20, 0
      %p150 = por %p148, %p149
      %p151 = scmp.ne.s32.totalorder %s143, %s145
      %p152 = scmp.eq.s32.totalorder %s25, 1
      %p153 = por %p151, %p152
      %p154 = scmp.ne.s32.totalorder %s145, %s146
      %p155 = scmp.eq.s32.totalorder %s25, 0
      %p156 = por %p154, %p155
      %p157 = scmp.ne.s32.totalorder %s145, %s146
      %p158 = scmp.eq.s32.totalorder %s26, 1
      %p159 = por %p157, %p158
      %p161 = scmp.ne.s32.totalorder %s146, %s160
      %p162 = scmp.eq.s32.totalorder %s26, 0
      %p163 = por %p161, %p162
      %s165 = sadd.s32 %s164, 1
      %p168 = scmp.eq.s32.totalorder %s20, 1
      %p169 = scmp.ne.s32.totalorder %s164, %s166
      %p170 = scmp.eq.s32.totalorder %s20, 0
      %p171 = por %p169, %p170
      %p172 = scmp.ne.s32.totalorder %s164, %s166
      %p173 = scmp.eq.s32.totalorder %s25, 1
      %p174 = por %p172, %p173
      %p175 = scmp.ne.s32.totalorder %s166, %s167
      %p176 = scmp.eq.s32.totalorder %s25, 0
      %p177 = por %p175, %p176
      %p178 = scmp.ne.s32.totalorder %s166, %s167
      %p179 = scmp.eq.s32.totalorder %s26, 1
      %p180 = por %p178, %p179
      %p182 = scmp.ne.s32.totalorder %s167, %s181
      %p183 = scmp.eq.s32.totalorder %s26, 0
      %p184 = por %p182, %p183
      %s186 = sadd.s32 %s185, 1
      %p189 = scmp.eq.s32.totalorder %s20, 1
      %p190 = scmp.ne.s32.totalorder %s185, %s187
      %p191 = scmp.eq.s32.totalorder %s20, 0
      %p192 = por %p190, %p191
      %p193 = scmp.ne.s32.totalorder %s185, %s187
      %p194 = scmp.eq.s32.totalorder %s25, 1
      %p195 = por %p193, %p194
      %p196 = scmp.ne.s32.totalorder %s187, %s188
      %p197 = scmp.eq.s32.totalorder %s25, 0
      %p198 = por %p196, %p197
      %p199 = scmp.ne.s32.totalorder %s187, %s188
      %p200 = scmp.eq.s32.totalorder %s26, 1
      %p201 = por %p199, %p200
      %p203 = scmp.ne.s32.totalorder %s188, %s202
      %p204 = scmp.eq.s32.totalorder %s26, 0
      %p205 = por %p203, %p204
      %s207 = sadd.s32 %s206, 1
      %p210 = scmp.eq.s32.totalorder %s20, 1
      %p211 = scmp.ne.s32.totalorder %s206, %s208
      %p212 = scmp.eq.s32.totalorder %s20, 0
      %p213 = por %p211, %p212
      %p214 = scmp.ne.s32.totalorder %s206, %s208
      %p215 = scmp.eq.s32.totalorder %s25, 1
      %p216 = por %p214, %p215
      %p217 = scmp.ne.s32.totalorder %s208, %s209
      %p218 = scmp.eq.s32.totalorder %s25, 0
      %p219 = por %p217, %p218
      %p220 = scmp.ne.s32.totalorder %s208, %s209
      %p221 = scmp.eq.s32.totalorder %s26, 1
      %p222 = por %p220, %p221
      %p224 = scmp.ne.s32.totalorder %s209, %s223
      %p225 = scmp.eq.s32.totalorder %s26, 0
      %p226 = por %p224, %p225
      %s227 = ssub.s32 %s20, %s27
      %p228 = scmp.eq.s32.totalorder %s227, 0
      %s230 = sadd.s32 %s229, 1
      %s231 = scalar_select %p228, %s229, %s230
      %p234 = pneg %p228
      %p235 = scmp.eq.s32.totalorder %s20, 1
      %p236 = por %p234, %p235
      %p237 = scmp.ne.s32.totalorder %s229, %s232
      %p238 = scmp.eq.s32.totalorder %s20, 0
      %p239 = por %p237, %p238
      %p240 = scmp.ne.s32.totalorder %s229, %s232
      %p241 = scmp.eq.s32.totalorder %s25, 1
      %p242 = por %p240, %p241
      %p243 = scmp.ne.s32.totalorder %s232, %s233
      %p244 = scmp.eq.s32.totalorder %s25, 0
      %p245 = por %p243, %p244
      %p246 = scmp.ne.s32.totalorder %s232, %s233
      %p247 = scmp.eq.s32.totalorder %s26, 1
      %p248 = por %p246, %p247
      %p250 = scmp.ne.s32.totalorder %s233, %s249
      %p251 = scmp.eq.s32.totalorder %s26, 0
      %p252 = por %p250, %p251
      %p253 = scmp.le.s32.totalorder 1, %s20
      %p254 = scmp.lt.s32.totalorder %s20, 3
      %p255 = pnand %p253, %p254
      %p256 = pneg %p255
      // Predicated region
      $region9: #{tpu_custom_call.1} parent=5 // pred_check
        _
      $region10: #{tpu_custom_call.1} parent=5 // pred_check_branch
        %258 = sbr.rel (%p255) target = $region12
      $region11: #{tpu_custom_call.1} parent=5 // pred_region
        %s259 = ssub.s32 %s20, 1
        // Predicated region
        $region13: #{tpu_custom_call.1} parent=11 // pred_check
          %p260 = pneg %p93
        $region14: #{tpu_custom_call.1} parent=11 // pred_check_branch
          %262 = sbr.rel (%p260) target = $region16
        $region15: #{tpu_custom_call.1} parent=11 // pred_region
          _
        $region16: #{tpu_custom_call.1} parent=11 // pred_fallthru
          _
        // Predicated region
        $region17: #{tpu_custom_call.1} parent=11 // pred_check
          %p263 = pneg %p114
        $region18: #{tpu_custom_call.1} parent=11 // pred_check_branch
          %265 = sbr.rel (%p263) target = $region20
        $region19: #{tpu_custom_call.1} parent=11 // pred_region
          _
        $region20: #{tpu_custom_call.1} parent=11 // pred_fallthru
          _
        // Predicated region
        $region21: #{tpu_custom_call.1} parent=11 // pred_check
          %p266 = pneg %p135
        $region22: #{tpu_custom_call.1} parent=11 // pred_check_branch
          %268 = sbr.rel (%p266) target = $region24
        $region23: #{tpu_custom_call.1} parent=11 // pred_region
          %s270 = ssub.s32 6144, 6144
          %271 = vsyncadd [#allocation4], %s270
          %s272 = sshll.u32 [#allocation3], 4
          %s273 = int_to_ptr.vmem [resolvable:$true] %s272
          %278 = dma.hbm_to_vmem [thread:$0]  %s4, 6144, %s273, [#allocation4], 128, 128, 8
        $region24: #{tpu_custom_call.1} parent=11 // pred_fallthru
          _
        // Predicated region
        $region25: #{tpu_custom_call.1} parent=11 // pred_check
          %p279 = pneg %p156
        $region26: #{tpu_custom_call.1} parent=11 // pred_check_branch
          %281 = sbr.rel (%p279) target = $region28
        $region27: #{tpu_custom_call.1} parent=11 // pred_region
          _
        $region28: #{tpu_custom_call.1} parent=11 // pred_fallthru
          _
        // Predicated region
        $region29: #{tpu_custom_call.1} parent=11 // pred_check
          %p282 = pneg %p177
        $region30: #{tpu_custom_call.1} parent=11 // pred_check_branch
          %284 = sbr.rel (%p282) target = $region32
        $region31: #{tpu_custom_call.1} parent=11 // pred_region
          _
        $region32: #{tpu_custom_call.1} parent=11 // pred_fallthru
          _
        // Predicated region
        $region33: #{tpu_custom_call.1} parent=11 // pred_check
          %p285 = pneg %p198
        $region34: #{tpu_custom_call.1} parent=11 // pred_check_branch
          %287 = sbr.rel (%p285) target = $region36
        $region35: #{tpu_custom_call.1} parent=11 // pred_region
          %s289 = ssub.s32 128, 128
          %290 = vsyncadd [#allocation7], %s289
          %s292 = sshll.u32 [#allocation6], 4
          %s293 = int_to_ptr.vmem [resolvable:$true] %s292
          %295 = dma.hbm_to_vmem [thread:$0]  %s7, 128, %s293, [#allocation7]
        $region36: #{tpu_custom_call.1} parent=11 // pred_fallthru
          _
        // Predicated region
        $region37: #{tpu_custom_call.1} parent=11 // pred_check
          %p296 = pneg %p219
        $region38: #{tpu_custom_call.1} parent=11 // pred_check_branch
          %298 = sbr.rel (%p296) target = $region40
        $region39: #{tpu_custom_call.1} parent=11 // pred_region
          _
        $region40: #{tpu_custom_call.1} parent=11 // pred_fallthru
          _
      $region12: #{tpu_custom_call.1} parent=5 // pred_fallthru
        _
      %p299 = scmp.lt.s32.totalorder %s20, 2
      // Predicated region
      $region41: #{tpu_custom_call.1} parent=5 // pred_check
        %p300 = pneg %p299
      $region42: #{tpu_custom_call.1} parent=5 // pred_check_branch
        %302 = sbr.rel (%p300) target = $region44
      $region43: #{tpu_custom_call.1} parent=5 // pred_region
        // Predicated region
        $region45: #{tpu_custom_call.1} parent=43 // pred_check
          %p303 = pneg %p40
        $region46: #{tpu_custom_call.1} parent=43 // pred_check_branch
          %305 = sbr.rel (%p303) target = $region48
        $region47: #{tpu_custom_call.1} parent=43 // pred_region
          %p306 = scmp.lt.s32.totalorder %s20, 1
          %s307 = scalar_select %p306, %s20, 1
          %s308 = smul.addr %s307, 3
          %s309 = smul.addr %s308, 8
          %s310 = scalar_lea.vmem %s0, %s309
        $region48: #{tpu_custom_call.1} parent=43 // pred_fallthru
          _
        // Predicated region
        $region49: #{tpu_custom_call.1} parent=43 // pred_check
          %p311 = pneg %p66
        $region50: #{tpu_custom_call.1} parent=43 // pred_check_branch
          %313 = sbr.rel (%p311) target = $region52
        $region51: #{tpu_custom_call.1} parent=43 // pred_region
          %p314 = scmp.lt.s32.totalorder %s20, 1
          %s315 = scalar_select %p314, %s20, 1
          %s316 = smul.addr %s315, 2
          %s317 = smul.addr %s316, 8
          %s318 = scalar_lea.vmem %s1, %s317
        $region52: #{tpu_custom_call.1} parent=43 // pred_fallthru
          _
      $region44: #{tpu_custom_call.1} parent=5 // pred_fallthru
        _
      %p319 = scmp.le.s32.totalorder 1, %s20
      %p320 = scmp.lt.s32.totalorder %s20, 3
      %p321 = pnand %p319, %p320
      %p322 = pneg %p321
      // Predicated region
      $region53: #{tpu_custom_call.1} parent=5 // pred_check
        _
      $region54: #{tpu_custom_call.1} parent=5 // pred_check_branch
        %324 = sbr.rel (%p321) target = $region56
      $region55: #{tpu_custom_call.1} parent=5 // pred_region
        %s325 = ssub.s32 %s20, 1
        // Predicated region
        $region57: #{tpu_custom_call.1} parent=55 // pred_check
          %p326 = pneg %p135
        $region58: #{tpu_custom_call.1} parent=55 // pred_check_branch
          %328 = sbr.rel (%p326) target = $region60
        $region59: #{tpu_custom_call.1} parent=55 // pred_region
          %329 = dma.done [#allocation4], 6144
        $region60: #{tpu_custom_call.1} parent=55 // pred_fallthru
          _
        // Predicated region
        $region61: #{tpu_custom_call.1} parent=55 // pred_check
          %p330 = pneg %p198
        $region62: #{tpu_custom_call.1} parent=55 // pred_check_branch
          %332 = sbr.rel (%p330) target = $region64
        $region63: #{tpu_custom_call.1} parent=55 // pred_region
          %333 = dma.done [#allocation7], 128
        $region64: #{tpu_custom_call.1} parent=55 // pred_fallthru
          _
        %p334 = scmp.lt.s32.totalorder %s25, 1
        %s335 = scalar_select %p334, %s25, 1
        %s336 = smul.addr %s335, 3
        %s337 = smul.addr %s336, 8
        %s338 = scalar_lea.vmem %s0, %s337
        %p339 = pneg %p46
        %p340 = pneg %p43
        %p341 = scmp.lt.s32.totalorder %s25, 1
        %s342 = scalar_select %p341, %s25, 1
        %s343 = smul.addr %s342, 2
        %s344 = smul.addr %s343, 8
        %s345 = scalar_lea.vmem %s1, %s344
        %p346 = pneg %p72
        %p347 = pneg %p69
        %p348 = pneg %p93
        %p349 = pneg %p90
        %p350 = pneg %p114
        %p351 = pneg %p111
        %p352 = pneg %p135
        %p353 = pneg %p132
        %p354 = pneg %p156
        %p355 = pneg %p153
        %p356 = pneg %p177
        %p357 = pneg %p174
        %p358 = pneg %p198
        %p359 = pneg %p195
        %p360 = pneg %p219
        %p361 = pneg %p216
        %p362 = pneg %p245
        %p363 = pneg %p242
        %s364 = sand.u32 %s232, 1
        %s365 = scalar_lea.sflag [#allocation5], %s364
        %s366 = sand.u32 %s232, 1
        %s367 = smul.addr %s366, 8
        %s368 = scalar_lea.vmem [#allocation8], %s367
        %p369 = scmp.lt.s32.totalorder %s25, 1
        %s370 = scalar_select %p369, %s25, 1
        %s371 = smul.addr %s370, 3
        %s372 = smul.addr %s371, 8
        %s373 = scalar_lea.vmem %s0, %s372
        %p374 = scmp.lt.s32.totalorder %s25, 1
        %s375 = scalar_select %p374, %s25, 1
        %s376 = smul.addr %s375, 2
        %s377 = smul.addr %s376, 8
        %s378 = scalar_lea.vmem %s1, %s377
        %379 = vst [vmem:[#allocation2] sm:$0x1] 0.0
        %380 = vst [vmem:[#allocation2 + $0x11] sm:$0x1] 0.0
        %v381 = vld [vmem:[%s373] sm:$0xff]
        %v382 = vld [vmem:[%s373 + $0x8] sm:$0xff]
        %v383 = vld [vmem:[%s2] sm:$0xff]
        %v384 = vld [vmem:[%s2 + $0x8] sm:$0xff]
        %v385 = vld [vmem:[%s2 + $0x10] sm:$0xff]
        %v386 = vld [vmem:[%s2 + $0x18] sm:$0xff]
        %v387 = vld [vmem:[%s2 + $0x20] sm:$0xff]
        %v388 = vld [vmem:[%s2 + $0x28] sm:$0xff]
        %v389 = vld [vmem:[%s2 + $0x30] sm:$0xff]
        %v390 = vld [vmem:[%s2 + $0x38] sm:$0xff]
        %v391 = vld [vmem:[%s373 + $0x1] sm:$0xff]
        %v392 = vld [vmem:[%s373 + $0x9] sm:$0xff]
        %s393 = scalar_lea.vmem %s2, 64
        %v394 = vld [vmem:[%s393] sm:$0xff]
        %v395 = vld [vmem:[%s393 + $0x8] sm:$0xff]
        %v396 = vld [vmem:[%s393 + $0x10] sm:$0xff]
        %v397 = vld [vmem:[%s393 + $0x18] sm:$0xff]
        %v398 = vld [vmem:[%s393 + $0x20] sm:$0xff]
        %v399 = vld [vmem:[%s393 + $0x28] sm:$0xff]
        %v400 = vld [vmem:[%s393 + $0x30] sm:$0xff]
        %v401 = vld [vmem:[%s393 + $0x38] sm:$0xff]
        %vm402 = vcmask 523264
        %v404 = vsel %vm402, %v391, 0
        %v407 = vsel %vm402, %v392, 0
        %409 = vmatprep.subr.mxu0 0.0
        %410 = vmatpush1.msra.mxu0 %v394
        %411 = vmatprep.subr.mxu0 0.0
        %412 = vmatpush1.msra.mxu0 %v395
        %413 = vmatprep.subr.mxu0 0.0
        %414 = vmatpush1.msra.mxu0 %v396
        %415 = vmatprep.subr.mxu0 0.0
        %416 = vmatpush1.msra.mxu0 %v397
        %417 = vmatprep.subr.mxu0 0.0
        %418 = vmatpush1.msra.mxu0 %v398
        %419 = vmatprep.subr.mxu0 0.0
        %420 = vmatpush1.msra.mxu0 %v399
        %421 = vmatprep.subr.mxu0 0.0
        %422 = vmatpush1.msra.mxu0 %v400
        %423 = vmatprep.subr.mxu0 0.0
        %424 = vmatpush1.msra.mxu0 %v401
        %425 = vmatprep.subr.mxu0 0.0
        %426 = vmatpush1.msra.mxu0 0.0
        %427 = vmatprep.subr.mxu0 0.0
        %428 = vmatpush1.msra.mxu0 0.0
        %429 = vmatprep.subr.mxu0 0.0
        %430 = vmatpush1.msra.mxu0 0.0
        %431 = vmatprep.subr.mxu0 0.0
        %432 = vmatpush1.msra.mxu0 0.0
        %433 = vmatprep.subr.mxu0 0.0
        %434 = vmatpush1.msra.mxu0 0.0
        %435 = vmatprep.subr.mxu0 0.0
        %436 = vmatpush1.msra.mxu0 0.0
        %437 = vmatprep.subr.mxu0 0.0
        %438 = vmatpush1.msra.mxu0 0.0
        %439 = vmatprep.subr.mxu0 0.0
        %440 = vmatpush1.msra.mxu0 0.0
        %441 = vmatprep.subr.mxu0 0.0
        %442 = vmatpush1.msra.mxu0 0.0
        %443 = vmatprep.subr.mxu0 0.0
        %444 = vmatpush1.msra.mxu0 0.0
        %445 = vmatprep.subr.mxu0 0.0
        %446 = vmatpush1.msra.mxu0 0.0
        %447 = vmatprep.subr.mxu0 0.0
        %448 = vmatpush1.msra.mxu0 0.0
        %449 = vmatprep.subr.mxu0 0.0
        %450 = vmatpush1.msra.mxu0 0.0
        %451 = vmatprep.subr.mxu0 0.0
        %452 = vmatpush1.msra.mxu0 0.0
        %453 = vmatprep.subr.mxu0 0.0
        %454 = vmatpush1.msra.mxu0 0.0
        %455 = vmatprep.subr.mxu0 0.0
        %456 = vmatpush1.msra.mxu0 0.0
        %457 = vmatprep.subr.mxu0 0.0
        %458 = vmatpush1.msra.mxu0 0.0
        %459 = vmatprep.subr.mxu0 0.0
        %460 = vmatpush1.msra.mxu0 0.0
        %461 = vmatprep.subr.mxu0 0.0
        %462 = vmatpush1.msra.mxu0 0.0
        %463 = vmatprep.subr.mxu0 0.0
        %464 = vmatpush1.msra.mxu0 0.0
        %465 = vmatprep.subr.mxu0 0.0
        %466 = vmatpush1.msra.mxu0 0.0
        %467 = vmatprep.subr.mxu0 0.0
        %468 = vmatpush1.msra.mxu0 0.0
        %469 = vmatprep.subr.mxu0 0.0
        %470 = vmatpush1.msra.mxu0 0.0
        %471 = vmatprep.subr.mxu0 0.0
        %472 = vmatpush1.msra.mxu0 0.0
        %473 = vmatprep.mubr.f32.mxu0 0.0
        %474 = vmatmul.mubr.f32.gmra.mrb[0].mxu0 %v404
        %v475 = vpop.f32.mrb[0].mxu0
        %v476 = vadd.f32 0.0, %v475
        %v477 = vpop.f32.mrb[0].mxu0
        %478 = vmatprep.mubr.f32.mxu0 0.0
        %479 = vmatmul.mubr.f32.gmra.mrb[0].mxu0 %v407
        %v480 = vpop.f32.mrb[0].mxu0
        %v481 = vadd.f32 0.0, %v480
        %v482 = vpop.f32.mrb[0].mxu0
        %483 = vdwg.mxu0
        %v485 = vsel %vm402, %v381, 0
        %v488 = vsel %vm402, %v382, 0
        %490 = vmatprep.subr.mxu0 0.0
        %491 = vmatpush1.msra.mxu0 %v383
        %492 = vmatprep.subr.mxu0 0.0
        %493 = vmatpush1.msra.mxu0 %v384
        %494 = vmatprep.subr.mxu0 0.0
        %495 = vmatpush1.msra.mxu0 %v385
        %496 = vmatprep.subr.mxu0 0.0
        %497 = vmatpush1.msra.mxu0 %v386
        %498 = vmatprep.subr.mxu0 0.0
        %499 = vmatpush1.msra.mxu0 %v387
        %500 = vmatprep.subr.mxu0 0.0
        %501 = vmatpush1.msra.mxu0 %v388
        %502 = vmatprep.subr.mxu0 0.0
        %503 = vmatpush1.msra.mxu0 %v389
        %504 = vmatprep.subr.mxu0 0.0
        %505 = vmatpush1.msra.mxu0 %v390
        %506 = vmatprep.subr.mxu0 0.0
        %507 = vmatpush1.msra.mxu0 0.0
        %508 = vmatprep.subr.mxu0 0.0
        %509 = vmatpush1.msra.mxu0 0.0
        %510 = vmatprep.subr.mxu0 0.0
        %511 = vmatpush1.msra.mxu0 0.0
        %512 = vmatprep.subr.mxu0 0.0
        %513 = vmatpush1.msra.mxu0 0.0
        %514 = vmatprep.subr.mxu0 0.0
        %515 = vmatpush1.msra.mxu0 0.0
        %516 = vmatprep.subr.mxu0 0.0
        %517 = vmatpush1.msra.mxu0 0.0
        %518 = vmatprep.subr.mxu0 0.0
        %519 = vmatpush1.msra.mxu0 0.0
        %520 = vmatprep.subr.mxu0 0.0
        %521 = vmatpush1.msra.mxu0 0.0
        %522 = vmatprep.subr.mxu0 0.0
        %523 = vmatpush1.msra.mxu0 0.0
        %524 = vmatprep.subr.mxu0 0.0
        %525 = vmatpush1.msra.mxu0 0.0
        %526 = vmatprep.subr.mxu0 0.0
        %527 = vmatpush1.msra.mxu0 0.0
        %528 = vmatprep.subr.mxu0 0.0
        %529 = vmatpush1.msra.mxu0 0.0
        %530 = vmatprep.subr.mxu0 0.0
        %531 = vmatpush1.msra.mxu0 0.0
        %532 = vmatprep.subr.mxu0 0.0
        %533 = vmatpush1.msra.mxu0 0.0
        %534 = vmatprep.subr.mxu0 0.0
        %535 = vmatpush1.msra.mxu0 0.0
        %536 = vmatprep.subr.mxu0 0.0
        %537 = vmatpush1.msra.mxu0 0.0
        %538 = vmatprep.subr.mxu0 0.0
        %539 = vmatpush1.msra.mxu0 0.0
        %540 = vmatprep.subr.mxu0 0.0
        %541 = vmatpush1.msra.mxu0 0.0
        %542 = vmatprep.subr.mxu0 0.0
        %543 = vmatpush1.msra.mxu0 0.0
        %544 = vmatprep.subr.mxu0 0.0
        %545 = vmatpush1.msra.mxu0 0.0
        %546 = vmatprep.subr.mxu0 0.0
        %547 = vmatpush1.msra.mxu0 0.0
        %548 = vmatprep.subr.mxu0 0.0
        %549 = vmatpush1.msra.mxu0 0.0
        %550 = vmatprep.subr.mxu0 0.0
        %551 = vmatpush1.msra.mxu0 0.0
        %552 = vmatprep.subr.mxu0 0.0
        %553 = vmatpush1.msra.mxu0 0.0
        %554 = vmatprep.mubr.f32.mxu0 0.0
        %555 = vmatmul.mubr.f32.gmra.mrb[0].mxu0 %v485
        %v556 = vpop.f32.mrb[0].mxu0
        %v557 = vadd.f32 %v476, %v556
        %v558 = vpop.f32.mrb[0].mxu0
        %559 = vmatprep.mubr.f32.mxu0 0.0
        %560 = vmatmul.mubr.f32.gmra.mrb[0].mxu0 %v488
        %v561 = vpop.f32.mrb[0].mxu0
        %v562 = vadd.f32 %v481, %v561
        %v563 = vpop.f32.mrb[0].mxu0
        %564 = vdwg.mxu0
        %v565 = vld [vmem:[%s373 + $0x2] sm:$0xff]
        %v566 = vld [vmem:[%s373 + $0xa] sm:$0xff]
        %s567 = scalar_lea.vmem %s2, 128
        %v568 = vld [vmem:[%s567] sm:$0xff]
        %v569 = vld [vmem:[%s567 + $0x8] sm:$0xff]
        %v570 = vld [vmem:[%s567 + $0x10] sm:$0xff]
        %v571 = vld [vmem:[%s567 + $0x18] sm:$0xff]
        %v572 = vld [vmem:[%s567 + $0x20] sm:$0xff]
        %v573 = vld [vmem:[%s567 + $0x28] sm:$0xff]
        %v574 = vld [vmem:[%s567 + $0x30] sm:$0xff]
        %v575 = vld [vmem:[%s567 + $0x38] sm:$0xff]
        %v577 = vsel %vm402, %v565, 0
        %v580 = vsel %vm402, %v566, 0
        %582 = vmatprep.subr.mxu0 0.0
        %583 = vmatpush1.msra.mxu0 %v568
        %584 = vmatprep.subr.mxu0 0.0
        %585 = vmatpush1.msra.mxu0 %v569
        %586 = vmatprep.subr.mxu0 0.0
        %587 = vmatpush1.msra.mxu0 %v570
        %588 = vmatprep.subr.mxu0 0.0
        %589 = vmatpush1.msra.mxu0 %v571
        %590 = vmatprep.subr.mxu0 0.0
        %591 = vmatpush1.msra.mxu0 %v572
        %592 = vmatprep.subr.mxu0 0.0
        %593 = vmatpush1.msra.mxu0 %v573
        %594 = vmatprep.subr.mxu0 0.0
        %595 = vmatpush1.msra.mxu0 %v574
        %596 = vmatprep.subr.mxu0 0.0
        %597 = vmatpush1.msra.mxu0 %v575
        %598 = vmatprep.subr.mxu0 0.0
        %599 = vmatpush1.msra.mxu0 0.0
        %600 = vmatprep.subr.mxu0 0.0
        %601 = vmatpush1.msra.mxu0 0.0
        %602 = vmatprep.subr.mxu0 0.0
        %603 = vmatpush1.msra.mxu0 0.0
        %604 = vmatprep.subr.mxu0 0.0
        %605 = vmatpush1.msra.mxu0 0.0
        %606 = vmatprep.subr.mxu0 0.0
        %607 = vmatpush1.msra.mxu0 0.0
        %608 = vmatprep.subr.mxu0 0.0
        %609 = vmatpush1.msra.mxu0 0.0
        %610 = vmatprep.subr.mxu0 0.0
        %611 = vmatpush1.msra.mxu0 0.0
        %612 = vmatprep.subr.mxu0 0.0
        %613 = vmatpush1.msra.mxu0 0.0
        %614 = vmatprep.subr.mxu0 0.0
        %615 = vmatpush1.msra.mxu0 0.0
        %616 = vmatprep.subr.mxu0 0.0
        %617 = vmatpush1.msra.mxu0 0.0
        %618 = vmatprep.subr.mxu0 0.0
        %619 = vmatpush1.msra.mxu0 0.0
        %620 = vmatprep.subr.mxu0 0.0
        %621 = vmatpush1.msra.mxu0 0.0
        %622 = vmatprep.subr.mxu0 0.0
        %623 = vmatpush1.msra.mxu0 0.0
        %624 = vmatprep.subr.mxu0 0.0
        %625 = vmatpush1.msra.mxu0 0.0
        %626 = vmatprep.subr.mxu0 0.0
        %627 = vmatpush1.msra.mxu0 0.0
        %628 = vmatprep.subr.mxu0 0.0
        %629 = vmatpush1.msra.mxu0 0.0
        %630 = vmatprep.subr.mxu0 0.0
        %631 = vmatpush1.msra.mxu0 0.0
        %632 = vmatprep.subr.mxu0 0.0
        %633 = vmatpush1.msra.mxu0 0.0
        %634 = vmatprep.subr.mxu0 0.0
        %635 = vmatpush1.msra.mxu0 0.0
        %636 = vmatprep.subr.mxu0 0.0
        %637 = vmatpush1.msra.mxu0 0.0
        %638 = vmatprep.subr.mxu0 0.0
        %639 = vmatpush1.msra.mxu0 0.0
        %640 = vmatprep.subr.mxu0 0.0
        %641 = vmatpush1.msra.mxu0 0.0
        %642 = vmatprep.subr.mxu0 0.0
        %643 = vmatpush1.msra.mxu0 0.0
        %644 = vmatprep.subr.mxu0 0.0
        %645 = vmatpush1.msra.mxu0 0.0
        %646 = vmatprep.mubr.f32.mxu0 0.0
        %647 = vmatmul.mubr.f32.gmra.mrb[0].mxu0 %v577
        %v648 = vpop.f32.mrb[0].mxu0
        %v649 = vadd.f32 0.0, %v648
        %v650 = vpop.f32.mrb[0].mxu0
        %651 = vmatprep.mubr.f32.mxu0 0.0
        %652 = vmatmul.mubr.f32.gmra.mrb[0].mxu0 %v580
        %v653 = vpop.f32.mrb[0].mxu0
        %v654 = vadd.f32 0.0, %v653
        %v655 = vpop.f32.mrb[0].mxu0
        %656 = vdwg.mxu0
        %v657 = vadd.f32 %v557, %v649
        %v658 = vadd.f32 %v562, %v654
        %v659 = vld [vmem:[%s3] sm:$0x1]
        %v661 = vlaneseq
        %v662 = vshrl.u32 %v661, 7
        %v663 = vsub.s32 0, %v662
        %v664 = vrot.slane %v659, %v663
        %v666 = vadd.f32 %v657, %v664
        %v667 = vadd.f32 %v658, %v664
        %v668 = vtanh.pop %v666
        %v669 = vtanh.pop %v667
        %670 = vst [vmem:[#allocation2 + $0x1] sm:$0xff] %v668
        %671 = vst [vmem:[#allocation2 + $0x9] sm:$0xff] %v669
        %v672 = vld [vmem:[#allocation2] sm:$0xff]
        %v673 = vld [vmem:[#allocation2 + $0x8] sm:$0xff]
        %v674 = vld [vmem:[#allocation3] sm:$0xff]
        %v675 = vld [vmem:[#allocation3 + $0x8] sm:$0xff]
        %v676 = vld [vmem:[#allocation3 + $0x10] sm:$0xff]
        %v677 = vld [vmem:[#allocation3 + $0x18] sm:$0xff]
        %v678 = vld [vmem:[#allocation3 + $0x20] sm:$0xff]
        %v679 = vld [vmem:[#allocation3 + $0x28] sm:$0xff]
        %v680 = vld [vmem:[#allocation3 + $0x30] sm:$0xff]
        %v681 = vld [vmem:[#allocation3 + $0x38] sm:$0xff]
        %v682 = vld [vmem:[#allocation3 + $0x40] sm:$0xff]
        %v683 = vld [vmem:[#allocation3 + $0x48] sm:$0xff]
        %v684 = vld [vmem:[#allocation3 + $0x50] sm:$0xff]
        %v685 = vld [vmem:[#allocation3 + $0x58] sm:$0xff]
        %v686 = vld [vmem:[#allocation3 + $0x60] sm:$0xff]
        %v687 = vld [vmem:[#allocation3 + $0x68] sm:$0xff]
        %v688 = vld [vmem:[#allocation3 + $0x70] sm:$0xff]
        %v689 = vld [vmem:[#allocation3 + $0x78] sm:$0xff]
        %v690 = vld [vmem:[#allocation2 + $0x1] sm:$0xff]
        %v691 = vld [vmem:[#allocation2 + $0x9] sm:$0xff]
        %s692 = scalar_lea.vmem [#allocation3], 128
        %v693 = vld [vmem:[%s692] sm:$0xff]
        %v694 = vld [vmem:[%s692 + $0x8] sm:$0xff]
        %v695 = vld [vmem:[%s692 + $0x10] sm:$0xff]
        %v696 = vld [vmem:[%s692 + $0x18] sm:$0xff]
        %v697 = vld [vmem:[%s692 + $0x20] sm:$0xff]
        %v698 = vld [vmem:[%s692 + $0x28] sm:$0xff]
        %v699 = vld [vmem:[%s692 + $0x30] sm:$0xff]
        %v700 = vld [vmem:[%s692 + $0x38] sm:$0xff]
        %v701 = vld [vmem:[%s692 + $0x40] sm:$0xff]
        %v702 = vld [vmem:[%s692 + $0x48] sm:$0xff]
        %v703 = vld [vmem:[%s692 + $0x50] sm:$0xff]
        %v704 = vld [vmem:[%s692 + $0x58] sm:$0xff]
        %v705 = vld [vmem:[%s692 + $0x60] sm:$0xff]
        %v706 = vld [vmem:[%s692 + $0x68] sm:$0xff]
        %v707 = vld [vmem:[%s692 + $0x70] sm:$0xff]
        %v708 = vld [vmem:[%s692 + $0x78] sm:$0xff]
        %709 = vmatprep.subr.mxu0 0.0
        %710 = vmatpush1.msra.mxu0 %v693
        %711 = vmatprep.subr.mxu0 0.0
        %712 = vmatpush1.msra.mxu0 %v694
        %713 = vmatprep.subr.mxu0 0.0
        %714 = vmatpush1.msra.mxu0 %v695
        %715 = vmatprep.subr.mxu0 0.0
        %716 = vmatpush1.msra.mxu0 %v696
        %717 = vmatprep.subr.mxu0 0.0
        %718 = vmatpush1.msra.mxu0 %v697
        %719 = vmatprep.subr.mxu0 0.0
        %720 = vmatpush1.msra.mxu0 %v698
        %721 = vmatprep.subr.mxu0 0.0
        %722 = vmatpush1.msra.mxu0 %v699
        %723 = vmatprep.subr.mxu0 0.0
        %724 = vmatpush1.msra.mxu0 %v700
        %725 = vmatprep.subr.mxu0 0.0
        %726 = vmatpush1.msra.mxu0 %v701
        %727 = vmatprep.subr.mxu0 0.0
        %728 = vmatpush1.msra.mxu0 %v702
        %729 = vmatprep.subr.mxu0 0.0
        %730 = vmatpush1.msra.mxu0 %v703
        %731 = vmatprep.subr.mxu0 0.0
        %732 = vmatpush1.msra.mxu0 %v704
        %733 = vmatprep.subr.mxu0 0.0
        %734 = vmatpush1.msra.mxu0 %v705
        %735 = vmatprep.subr.mxu0 0.0
        %736 = vmatpush1.msra.mxu0 %v706
        %737 = vmatprep.subr.mxu0 0.0
        %738 = vmatpush1.msra.mxu0 %v707
        %739 = vmatprep.subr.mxu0 0.0
        %740 = vmatpush1.msra.mxu0 %v708
        %741 = vmatprep.subr.mxu0 0.0
        %742 = vmatpush1.msra.mxu0 0.0
        %743 = vmatprep.subr.mxu0 0.0
        %744 = vmatpush1.msra.mxu0 0.0
        %745 = vmatprep.subr.mxu0 0.0
        %746 = vmatpush1.msra.mxu0 0.0
        %747 = vmatprep.subr.mxu0 0.0
        %748 = vmatpush1.msra.mxu0 0.0
        %749 = vmatprep.subr.mxu0 0.0
        %750 = vmatpush1.msra.mxu0 0.0
        %751 = vmatprep.subr.mxu0 0.0
        %752 = vmatpush1.msra.mxu0 0.0
        %753 = vmatprep.subr.mxu0 0.0
        %754 = vmatpush1.msra.mxu0 0.0
        %755 = vmatprep.subr.mxu0 0.0
        %756 = vmatpush1.msra.mxu0 0.0
        %757 = vmatprep.subr.mxu0 0.0
        %758 = vmatpush1.msra.mxu0 0.0
        %759 = vmatprep.subr.mxu0 0.0
        %760 = vmatpush1.msra.mxu0 0.0
        %761 = vmatprep.subr.mxu0 0.0
        %762 = vmatpush1.msra.mxu0 0.0
        %763 = vmatprep.subr.mxu0 0.0
        %764 = vmatpush1.msra.mxu0 0.0
        %765 = vmatprep.subr.mxu0 0.0
        %766 = vmatpush1.msra.mxu0 0.0
        %767 = vmatprep.subr.mxu0 0.0
        %768 = vmatpush1.msra.mxu0 0.0
        %769 = vmatprep.subr.mxu0 0.0
        %770 = vmatpush1.msra.mxu0 0.0
        %771 = vmatprep.subr.mxu0 0.0
        %772 = vmatpush1.msra.mxu0 0.0
        %773 = vmatprep.mubr.f32.mxu0 0.0
        %774 = vmatmul.mubr.f32.gmra.mrb[0].mxu0 %v690
        %v775 = vpop.f32.mrb[0].mxu0
        %v776 = vadd.f32 0.0, %v775
        %v777 = vpop.f32.mrb[0].mxu0
        %778 = vmatprep.mubr.f32.mxu0 0.0
        %779 = vmatmul.mubr.f32.gmra.mrb[0].mxu0 %v691
        %v780 = vpop.f32.mrb[0].mxu0
        %v781 = vadd.f32 0.0, %v780
        %v782 = vpop.f32.mrb[0].mxu0
        %783 = vdwg.mxu0
        %784 = vmatprep.subr.mxu0 0.0
        %785 = vmatpush1.msra.mxu0 %v674
        %786 = vmatprep.subr.mxu0 0.0
        %787 = vmatpush1.msra.mxu0 %v675
        %788 = vmatprep.subr.mxu0 0.0
        %789 = vmatpush1.msra.mxu0 %v676
        %790 = vmatprep.subr.mxu0 0.0
        %791 = vmatpush1.msra.mxu0 %v677
        %792 = vmatprep.subr.mxu0 0.0
        %793 = vmatpush1.msra.mxu0 %v678
        %794 = vmatprep.subr.mxu0 0.0
        %795 = vmatpush1.msra.mxu0 %v679
        %796 = vmatprep.subr.mxu0 0.0
        %797 = vmatpush1.msra.mxu0 %v680
        %798 = vmatprep.subr.mxu0 0.0
        %799 = vmatpush1.msra.mxu0 %v681
        %800 = vmatprep.subr.mxu0 0.0
        %801 = vmatpush1.msra.mxu0 %v682
        %802 = vmatprep.subr.mxu0 0.0
        %803 = vmatpush1.msra.mxu0 %v683
        %804 = vmatprep.subr.mxu0 0.0
        %805 = vmatpush1.msra.mxu0 %v684
        %806 = vmatprep.subr.mxu0 0.0
        %807 = vmatpush1.msra.mxu0 %v685
        %808 = vmatprep.subr.mxu0 0.0
        %809 = vmatpush1.msra.mxu0 %v686
        %810 = vmatprep.subr.mxu0 0.0
        %811 = vmatpush1.msra.mxu0 %v687
        %812 = vmatprep.subr.mxu0 0.0
        %813 = vmatpush1.msra.mxu0 %v688
        %814 = vmatprep.subr.mxu0 0.0
        %815 = vmatpush1.msra.mxu0 %v689
        %816 = vmatprep.subr.mxu0 0.0
        %817 = vmatpush1.msra.mxu0 0.0
        %818 = vmatprep.subr.mxu0 0.0
        %819 = vmatpush1.msra.mxu0 0.0
        %820 = vmatprep.subr.mxu0 0.0
        %821 = vmatpush1.msra.mxu0 0.0
        %822 = vmatprep.subr.mxu0 0.0
        %823 = vmatpush1.msra.mxu0 0.0
        %824 = vmatprep.subr.mxu0 0.0
        %825 = vmatpush1.msra.mxu0 0.0
        %826 = vmatprep.subr.mxu0 0.0
        %827 = vmatpush1.msra.mxu0 0.0
        %828 = vmatprep.subr.mxu0 0.0
        %829 = vmatpush1.msra.mxu0 0.0
        %830 = vmatprep.subr.mxu0 0.0
        %831 = vmatpush1.msra.mxu0 0.0
        %832 = vmatprep.subr.mxu0 0.0
        %833 = vmatpush1.msra.mxu0 0.0
        %834 = vmatprep.subr.mxu0 0.0
        %835 = vmatpush1.msra.mxu0 0.0
        %836 = vmatprep.subr.mxu0 0.0
        %837 = vmatpush1.msra.mxu0 0.0
        %838 = vmatprep.subr.mxu0 0.0
        %839 = vmatpush1.msra.mxu0 0.0
        %840 = vmatprep.subr.mxu0 0.0
        %841 = vmatpush1.msra.mxu0 0.0
        %842 = vmatprep.subr.mxu0 0.0
        %843 = vmatpush1.msra.mxu0 0.0
        %844 = vmatprep.subr.mxu0 0.0
        %845 = vmatpush1.msra.mxu0 0.0
        %846 = vmatprep.subr.mxu0 0.0
        %847 = vmatpush1.msra.mxu0 0.0
        %848 = vmatprep.mubr.f32.mxu0 0.0
        %849 = vmatmul.mubr.f32.gmra.mrb[0].mxu0 %v672
        %v850 = vpop.f32.mrb[0].mxu0
        %v851 = vadd.f32 %v776, %v850
        %v852 = vpop.f32.mrb[0].mxu0
        %853 = vmatprep.mubr.f32.mxu0 0.0
        %854 = vmatmul.mubr.f32.gmra.mrb[0].mxu0 %v673
        %v855 = vpop.f32.mrb[0].mxu0
        %v856 = vadd.f32 %v781, %v855
        %v857 = vpop.f32.mrb[0].mxu0
        %858 = vdwg.mxu0
        %v859 = vld [vmem:[#allocation2 + $0x2] sm:$0xff]
        %v860 = vld [vmem:[#allocation2 + $0xa] sm:$0xff]
        %s861 = scalar_lea.vmem [#allocation3], 256
        %v862 = vld [vmem:[%s861] sm:$0xff]
        %v863 = vld [vmem:[%s861 + $0x8] sm:$0xff]
        %v864 = vld [vmem:[%s861 + $0x10] sm:$0xff]
        %v865 = vld [vmem:[%s861 + $0x18] sm:$0xff]
        %v866 = vld [vmem:[%s861 + $0x20] sm:$0xff]
        %v867 = vld [vmem:[%s861 + $0x28] sm:$0xff]
        %v868 = vld [vmem:[%s861 + $0x30] sm:$0xff]
        %v869 = vld [vmem:[%s861 + $0x38] sm:$0xff]
        %v870 = vld [vmem:[%s861 + $0x40] sm:$0xff]
        %v871 = vld [vmem:[%s861 + $0x48] sm:$0xff]
        %v872 = vld [vmem:[%s861 + $0x50] sm:$0xff]
        %v873 = vld [vmem:[%s861 + $0x58] sm:$0xff]
        %v874 = vld [vmem:[%s861 + $0x60] sm:$0xff]
        %v875 = vld [vmem:[%s861 + $0x68] sm:$0xff]
        %v876 = vld [vmem:[%s861 + $0x70] sm:$0xff]
        %v877 = vld [vmem:[%s861 + $0x78] sm:$0xff]
        %878 = vmatprep.subr.mxu0 0.0
        %879 = vmatpush1.msra.mxu0 %v862
        %880 = vmatprep.subr.mxu0 0.0
        %881 = vmatpush1.msra.mxu0 %v863
        %882 = vmatprep.subr.mxu0 0.0
        %883 = vmatpush1.msra.mxu0 %v864
        %884 = vmatprep.subr.mxu0 0.0
        %885 = vmatpush1.msra.mxu0 %v865
        %886 = vmatprep.subr.mxu0 0.0
        %887 = vmatpush1.msra.mxu0 %v866
        %888 = vmatprep.subr.mxu0 0.0
        %889 = vmatpush1.msra.mxu0 %v867
        %890 = vmatprep.subr.mxu0 0.0
        %891 = vmatpush1.msra.mxu0 %v868
        %892 = vmatprep.subr.mxu0 0.0
        %893 = vmatpush1.msra.mxu0 %v869
        %894 = vmatprep.subr.mxu0 0.0
        %895 = vmatpush1.msra.mxu0 %v870
        %896 = vmatprep.subr.mxu0 0.0
        %897 = vmatpush1.msra.mxu0 %v871
        %898 = vmatprep.subr.mxu0 0.0
        %899 = vmatpush1.msra.mxu0 %v872
        %900 = vmatprep.subr.mxu0 0.0
        %901 = vmatpush1.msra.mxu0 %v873
        %902 = vmatprep.subr.mxu0 0.0
        %903 = vmatpush1.msra.mxu0 %v874
        %904 = vmatprep.subr.mxu0 0.0
        %905 = vmatpush1.msra.mxu0 %v875
        %906 = vmatprep.subr.mxu0 0.0
        %907 = vmatpush1.msra.mxu0 %v876
        %908 = vmatprep.subr.mxu0 0.0
        %909 = vmatpush1.msra.mxu0 %v877
        %910 = vmatprep.subr.mxu0 0.0
        %911 = vmatpush1.msra.mxu0 0.0
        %912 = vmatprep.subr.mxu0 0.0
        %913 = vmatpush1.msra.mxu0 0.0
        %914 = vmatprep.subr.mxu0 0.0
        %915 = vmatpush1.msra.mxu0 0.0
        %916 = vmatprep.subr.mxu0 0.0
        %917 = vmatpush1.msra.mxu0 0.0
        %918 = vmatprep.subr.mxu0 0.0
        %919 = vmatpush1.msra.mxu0 0.0
        %920 = vmatprep.subr.mxu0 0.0
        %921 = vmatpush1.msra.mxu0 0.0
        %922 = vmatprep.subr.mxu0 0.0
        %923 = vmatpush1.msra.mxu0 0.0
        %924 = vmatprep.subr.mxu0 0.0
        %925 = vmatpush1.msra.mxu0 0.0
        %926 = vmatprep.subr.mxu0 0.0
        %927 = vmatpush1.msra.mxu0 0.0
        %928 = vmatprep.subr.mxu0 0.0
        %929 = vmatpush1.msra.mxu0 0.0
        %930 = vmatprep.subr.mxu0 0.0
        %931 = vmatpush1.msra.mxu0 0.0
        %932 = vmatprep.subr.mxu0 0.0
        %933 = vmatpush1.msra.mxu0 0.0
        %934 = vmatprep.subr.mxu0 0.0
        %935 = vmatpush1.msra.mxu0 0.0
        %936 = vmatprep.subr.mxu0 0.0
        %937 = vmatpush1.msra.mxu0 0.0
        %938 = vmatprep.subr.mxu0 0.0
        %939 = vmatpush1.msra.mxu0 0.0
        %940 = vmatprep.subr.mxu0 0.0
        %941 = vmatpush1.msra.mxu0 0.0
        %942 = vmatprep.mubr.f32.mxu0 0.0
        %943 = vmatmul.mubr.f32.gmra.mrb[0].mxu0 %v859
        %v944 = vpop.f32.mrb[0].mxu0
        %v945 = vadd.f32 0.0, %v944
        %v946 = vpop.f32.mrb[0].mxu0
        %947 = vmatprep.mubr.f32.mxu0 0.0
        %948 = vmatmul.mubr.f32.gmra.mrb[0].mxu0 %v860
        %v949 = vpop.f32.mrb[0].mxu0
        %v950 = vadd.f32 0.0, %v949
        %v951 = vpop.f32.mrb[0].mxu0
        %952 = vdwg.mxu0
        %v953 = vadd.f32 %v851, %v945
        %v954 = vadd.f32 %v856, %v950
        %v955 = vld [vmem:[%s5] sm:$0x1]
        %v957 = vlaneseq
        %v958 = vshrl.u32 %v957, 7
        %v959 = vsub.s32 0, %v958
        %v960 = vrot.slane %v955, %v959
        %v962 = vadd.f32 %v953, %v960
        %v963 = vadd.f32 %v954, %v960
        %v964 = vld [vmem:[%s378] sm:$0xff]
        %v965 = vld [vmem:[%s378 + $0x8] sm:$0xff]
        %v966 = vld [vmem:[%s6] sm:$0xff]
        %v967 = vld [vmem:[%s6 + $0x8] sm:$0xff]
        %vm968 = vcmask 130048
        %v970 = vsel %vm968, %v964, 0
        %v973 = vsel %vm968, %v965, 0
        %975 = vmatprep.subr.mxu0 0.0
        %976 = vmatpush1.msra.mxu0 %v966
        %977 = vmatprep.subr.mxu0 0.0
        %978 = vmatpush1.msra.mxu0 %v967
        %979 = vmatprep.subr.mxu0 0.0
        %980 = vmatpush1.msra.mxu0 0.0
        %981 = vmatprep.subr.mxu0 0.0
        %982 = vmatpush1.msra.mxu0 0.0
        %983 = vmatprep.subr.mxu0 0.0
        %984 = vmatpush1.msra.mxu0 0.0
        %985 = vmatprep.subr.mxu0 0.0
        %986 = vmatpush1.msra.mxu0 0.0
        %987 = vmatprep.subr.mxu0 0.0
        %988 = vmatpush1.msra.mxu0 0.0
        %989 = vmatprep.subr.mxu0 0.0
        %990 = vmatpush1.msra.mxu0 0.0
        %991 = vmatprep.subr.mxu0 0.0
        %992 = vmatpush1.msra.mxu0 0.0
        %993 = vmatprep.subr.mxu0 0.0
        %994 = vmatpush1.msra.mxu0 0.0
        %995 = vmatprep.subr.mxu0 0.0
        %996 = vmatpush1.msra.mxu0 0.0
        %997 = vmatprep.subr.mxu0 0.0
        %998 = vmatpush1.msra.mxu0 0.0
        %999 = vmatprep.subr.mxu0 0.0
        %1000 = vmatpush1.msra.mxu0 0.0
        %1001 = vmatprep.subr.mxu0 0.0
        %1002 = vmatpush1.msra.mxu0 0.0
        %1003 = vmatprep.subr.mxu0 0.0
        %1004 = vmatpush1.msra.mxu0 0.0
        %1005 = vmatprep.subr.mxu0 0.0
        %1006 = vmatpush1.msra.mxu0 0.0
        %1007 = vmatprep.subr.mxu0 0.0
        %1008 = vmatpush1.msra.mxu0 0.0
        %1009 = vmatprep.subr.mxu0 0.0
        %1010 = vmatpush1.msra.mxu0 0.0
        %1011 = vmatprep.subr.mxu0 0.0
        %1012 = vmatpush1.msra.mxu0 0.0
        %1013 = vmatprep.subr.mxu0 0.0
        %1014 = vmatpush1.msra.mxu0 0.0
        %1015 = vmatprep.subr.mxu0 0.0
        %1016 = vmatpush1.msra.mxu0 0.0
        %1017 = vmatprep.subr.mxu0 0.0
        %1018 = vmatpush1.msra.mxu0 0.0
        %1019 = vmatprep.subr.mxu0 0.0
        %1020 = vmatpush1.msra.mxu0 0.0
        %1021 = vmatprep.subr.mxu0 0.0
        %1022 = vmatpush1.msra.mxu0 0.0
        %1023 = vmatprep.subr.mxu0 0.0
        %1024 = vmatpush1.msra.mxu0 0.0
        %1025 = vmatprep.subr.mxu0 0.0
        %1026 = vmatpush1.msra.mxu0 0.0
        %1027 = vmatprep.subr.mxu0 0.0
        %1028 = vmatpush1.msra.mxu0 0.0
        %1029 = vmatprep.subr.mxu0 0.0
        %1030 = vmatpush1.msra.mxu0 0.0
        %1031 = vmatprep.subr.mxu0 0.0
        %1032 = vmatpush1.msra.mxu0 0.0
        %1033 = vmatprep.subr.mxu0 0.0
        %1034 = vmatpush1.msra.mxu0 0.0
        %1035 = vmatprep.subr.mxu0 0.0
        %1036 = vmatpush1.msra.mxu0 0.0
        %1037 = vmatprep.subr.mxu0 0.0
        %1038 = vmatpush1.msra.mxu0 0.0
        %1039 = vmatprep.mubr.f32.mxu0 0.0
        %1040 = vmatmul.mubr.f32.gmra.mrb[0].mxu0 %v970
        %v1041 = vpop.f32.mrb[0].mxu0
        %v1042 = vadd.f32 0.0, %v1041
        %v1043 = vpop.f32.mrb[0].mxu0
        %1044 = vmatprep.mubr.f32.mxu0 0.0
        %1045 = vmatmul.mubr.f32.gmra.mrb[0].mxu0 %v973
        %v1046 = vpop.f32.mrb[0].mxu0
        %v1047 = vadd.f32 0.0, %v1046
        %v1048 = vpop.f32.mrb[0].mxu0
        %1049 = vdwg.mxu0
        %v1050 = vmul.f32 %v962, %v1042
        %v1051 = vmul.f32 %v963, %v1047
        %v1052 = vtanh.pop %v1050
        %v1053 = vtanh.pop %v1051
        %v1054 = vld [vmem:[#allocation6] sm:$0xff]
        %v1056 = vsel %vm968, %v1054, 0
        %1058 = vmatprep.subr.mxu0 0.0
        %1059 = vmatpush1.msra.mxu0 %v1052
        %1060 = vmatprep.subr.mxu0 0.0
        %1061 = vmatpush1.msra.mxu0 %v1053
        %1062 = vmatprep.subr.mxu0 0.0
        %1063 = vmatpush1.msra.mxu0 0.0
        %1064 = vmatprep.subr.mxu0 0.0
        %1065 = vmatpush1.msra.mxu0 0.0
        %1066 = vmatprep.subr.mxu0 0.0
        %1067 = vmatpush1.msra.mxu0 0.0
        %1068 = vmatprep.subr.mxu0 0.0
        %1069 = vmatpush1.msra.mxu0 0.0
        %1070 = vmatprep.subr.mxu0 0.0
        %1071 = vmatpush1.msra.mxu0 0.0
        %1072 = vmatprep.subr.mxu0 0.0
        %1073 = vmatpush1.msra.mxu0 0.0
        %1074 = vmatprep.subr.mxu0 0.0
        %1075 = vmatpush1.msra.mxu0 0.0
        %1076 = vmatprep.subr.mxu0 0.0
        %1077 = vmatpush1.msra.mxu0 0.0
        %1078 = vmatprep.subr.mxu0 0.0
        %1079 = vmatpush1.msra.mxu0 0.0
        %1080 = vmatprep.subr.mxu0 0.0
        %1081 = vmatpush1.msra.mxu0 0.0
        %1082 = vmatprep.subr.mxu0 0.0
        %1083 = vmatpush1.msra.mxu0 0.0
        %1084 = vmatprep.subr.mxu0 0.0
        %1085 = vmatpush1.msra.mxu0 0.0
        %1086 = vmatprep.subr.mxu0 0.0
        %1087 = vmatpush1.msra.mxu0 0.0
        %1088 = vmatprep.subr.mxu0 0.0
        %1089 = vmatpush1.msra.mxu0 0.0
        %1090 = vmatprep.subr.mxu0 0.0
        %1091 = vmatpush1.msra.mxu0 0.0
        %1092 = vmatprep.subr.mxu0 0.0
        %1093 = vmatpush1.msra.mxu0 0.0
        %1094 = vmatprep.subr.mxu0 0.0
        %1095 = vmatpush1.msra.mxu0 0.0
        %1096 = vmatprep.subr.mxu0 0.0
        %1097 = vmatpush1.msra.mxu0 0.0
        %1098 = vmatprep.subr.mxu0 0.0
        %1099 = vmatpush1.msra.mxu0 0.0
        %1100 = vmatprep.subr.mxu0 0.0
        %1101 = vmatpush1.msra.mxu0 0.0
        %1102 = vmatprep.subr.mxu0 0.0
        %1103 = vmatpush1.msra.mxu0 0.0
        %1104 = vmatprep.subr.mxu0 0.0
        %1105 = vmatpush1.msra.mxu0 0.0
        %1106 = vmatprep.subr.mxu0 0.0
        %1107 = vmatpush1.msra.mxu0 0.0
        %1108 = vmatprep.subr.mxu0 0.0
        %1109 = vmatpush1.msra.mxu0 0.0
        %1110 = vmatprep.subr.mxu0 0.0
        %1111 = vmatpush1.msra.mxu0 0.0
        %1112 = vmatprep.subr.mxu0 0.0
        %1113 = vmatpush1.msra.mxu0 0.0
        %1114 = vmatprep.subr.mxu0 0.0
        %1115 = vmatpush1.msra.mxu0 0.0
        %1116 = vmatprep.subr.mxu0 0.0
        %1117 = vmatpush1.msra.mxu0 0.0
        %1118 = vmatprep.subr.mxu0 0.0
        %1119 = vmatpush1.msra.mxu0 0.0
        %1120 = vmatprep.subr.mxu0 0.0
        %1121 = vmatpush1.msra.mxu0 0.0
        %1122 = vmatprep.mubr.f32.mxu0 0.0
        %1123 = vmatmul.mubr.f32.gmra.mrb[0].mxu0 %v1056
        %v1124 = vpop.f32.mrb[0].mxu0
        %v1125 = vadd.f32 0.0, %v1124
        %v1126 = vpop.f32.mrb[0].mxu0
        %1127 = vdwg.mxu0
        %v1128 = vld [vmem:[%s8] sm:$0xff]
        %v1129 = vld [vmem:[%s8 + $0x8] sm:$0xff]
        %v1130 = vld [vmem:[%s8 + $0x10] sm:$0xff]
        %v1131 = vld [vmem:[%s8 + $0x18] sm:$0xff]
        %v1132 = vld [vmem:[%s8 + $0x20] sm:$0xff]
        %v1133 = vld [vmem:[%s8 + $0x28] sm:$0xff]
        %v1134 = vld [vmem:[%s8 + $0x30] sm:$0xff]
        %v1135 = vld [vmem:[%s8 + $0x38] sm:$0xff]
        %v1136 = vld [vmem:[%s8 + $0x40] sm:$0xff]
        %v1137 = vld [vmem:[%s8 + $0x48] sm:$0xff]
        %v1138 = vld [vmem:[%s8 + $0x50] sm:$0xff]
        %v1139 = vld [vmem:[%s8 + $0x58] sm:$0xff]
        %v1140 = vld [vmem:[%s8 + $0x60] sm:$0xff]
        %v1141 = vld [vmem:[%s8 + $0x68] sm:$0xff]
        %v1142 = vld [vmem:[%s8 + $0x70] sm:$0xff]
        %v1143 = vld [vmem:[%s8 + $0x78] sm:$0xff]
        %1144 = vmatprep.subr.mxu0 0.0
        %1145 = vmatpush1.msra.mxu0 %v1128
        %1146 = vmatprep.subr.mxu0 0.0
        %1147 = vmatpush1.msra.mxu0 %v1129
        %1148 = vmatprep.subr.mxu0 0.0
        %1149 = vmatpush1.msra.mxu0 %v1130
        %1150 = vmatprep.subr.mxu0 0.0
        %1151 = vmatpush1.msra.mxu0 %v1131
        %1152 = vmatprep.subr.mxu0 0.0
        %1153 = vmatpush1.msra.mxu0 %v1132
        %1154 = vmatprep.subr.mxu0 0.0
        %1155 = vmatpush1.msra.mxu0 %v1133
        %1156 = vmatprep.subr.mxu0 0.0
        %1157 = vmatpush1.msra.mxu0 %v1134
        %1158 = vmatprep.subr.mxu0 0.0
        %1159 = vmatpush1.msra.mxu0 %v1135
        %1160 = vmatprep.subr.mxu0 0.0
        %1161 = vmatpush1.msra.mxu0 %v1136
        %1162 = vmatprep.subr.mxu0 0.0
        %1163 = vmatpush1.msra.mxu0 %v1137
        %1164 = vmatprep.subr.mxu0 0.0
        %1165 = vmatpush1.msra.mxu0 %v1138
        %1166 = vmatprep.subr.mxu0 0.0
        %1167 = vmatpush1.msra.mxu0 %v1139
        %1168 = vmatprep.subr.mxu0 0.0
        %1169 = vmatpush1.msra.mxu0 %v1140
        %1170 = vmatprep.subr.mxu0 0.0
        %1171 = vmatpush1.msra.mxu0 %v1141
        %1172 = vmatprep.subr.mxu0 0.0
        %1173 = vmatpush1.msra.mxu0 %v1142
        %1174 = vmatprep.subr.mxu0 0.0
        %1175 = vmatpush1.msra.mxu0 %v1143
        %1176 = vmatprep.subr.mxu0 0.0
        %1177 = vmatpush1.msra.mxu0 0.0
        %1178 = vmatprep.subr.mxu0 0.0
        %1179 = vmatpush1.msra.mxu0 0.0
        %1180 = vmatprep.subr.mxu0 0.0
        %1181 = vmatpush1.msra.mxu0 0.0
        %1182 = vmatprep.subr.mxu0 0.0
        %1183 = vmatpush1.msra.mxu0 0.0
        %1184 = vmatprep.subr.mxu0 0.0
        %1185 = vmatpush1.msra.mxu0 0.0
        %1186 = vmatprep.subr.mxu0 0.0
        %1187 = vmatpush1.msra.mxu0 0.0
        %1188 = vmatprep.subr.mxu0 0.0
        %1189 = vmatpush1.msra.mxu0 0.0
        %1190 = vmatprep.subr.mxu0 0.0
        %1191 = vmatpush1.msra.mxu0 0.0
        %1192 = vmatprep.subr.mxu0 0.0
        %1193 = vmatpush1.msra.mxu0 0.0
        %1194 = vmatprep.subr.mxu0 0.0
        %1195 = vmatpush1.msra.mxu0 0.0
        %1196 = vmatprep.subr.mxu0 0.0
        %1197 = vmatpush1.msra.mxu0 0.0
        %1198 = vmatprep.subr.mxu0 0.0
        %1199 = vmatpush1.msra.mxu0 0.0
        %1200 = vmatprep.subr.mxu0 0.0
        %1201 = vmatpush1.msra.mxu0 0.0
        %1202 = vmatprep.subr.mxu0 0.0
        %1203 = vmatpush1.msra.mxu0 0.0
        %1204 = vmatprep.subr.mxu0 0.0
        %1205 = vmatpush1.msra.mxu0 0.0
        %1206 = vmatprep.subr.mxu0 0.0
        %1207 = vmatpush1.msra.mxu0 0.0
        %1208 = vmatprep.mubr.f32.mxu0 0.0
        %1209 = vmatmul.mubr.f32.gmra.mrb[0].mxu0 %v1125
        %v1210 = vpop.f32.mrb[0].mxu0
        %v1211 = vadd.f32 0.0, %v1210
        %v1212 = vpop.f32.mrb[0].mxu0
        %1213 = vdwg.mxu0
        %1214 = vst.msk [vmem:[%s368] sm:$0xff] %vm402, %v1211
        %s1215 = sand.u32 %s232, 1
        %s1216 = scalar_lea.sflag [#allocation5], %s1215
        %s1217 = sand.u32 %s232, 1
        %s1218 = smul.addr %s1217, 8
        %s1219 = scalar_lea.vmem [#allocation8], %s1218
        // Predicated region
        $region65: #{tpu_custom_call.1} parent=55 // pred_check
          %p1220 = pneg %p242
        $region66: #{tpu_custom_call.1} parent=55 // pred_check_branch
          %1222 = sbr.rel (%p1220) target = $region68
        $region67: #{tpu_custom_call.1} parent=55 // pred_region
          %s1224 = ssub.s32 128, 128
          %1225 = vsyncadd %s1216, %s1224
          %s1226 = smul.addr %s25, 128
          %s1227 = scalar_lea.hbm %s9, %s1226
          %s1229 = sshll.u32 %s1219, 4
          %s1230 = int_to_ptr.vmem [resolvable:$true] %s1229
          %1232 = dma.vmem_to_hbm [thread:$0]  %s1230, 128, %s1227, %s1216
        $region68: #{tpu_custom_call.1} parent=55 // pred_fallthru
          _
      $region56: #{tpu_custom_call.1} parent=5 // pred_fallthru
        _
      %p1233 = scmp.le.s32.totalorder 2, %s20
      // Predicated region
      $region69: #{tpu_custom_call.1} parent=5 // pred_check
        %p1234 = pneg %p1233
      $region70: #{tpu_custom_call.1} parent=5 // pred_check_branch
        %1236 = sbr.rel (%p1234) target = $region72
      $region71: #{tpu_custom_call.1} parent=5 // pred_region
        %s1237 = ssub.s32 %s20, 2
        // Predicated region
        $region73: #{tpu_custom_call.1} parent=71 // pred_check
          %p1238 = pneg %p248
        $region74: #{tpu_custom_call.1} parent=71 // pred_check_branch
          %1240 = sbr.rel (%p1238) target = $region76
        $region75: #{tpu_custom_call.1} parent=71 // pred_region
          %s1241 = sand.u32 %s233, 1
          %s1242 = scalar_lea.sflag [#allocation5], %s1241
          %s1243 = sand.u32 %s233, 1
          %s1244 = smul.addr %s1243, 8
          %s1245 = scalar_lea.vmem [#allocation8], %s1244
          %1246 = dma.done %s1242, 128
        $region76: #{tpu_custom_call.1} parent=71 // pred_fallthru
          _
      $region72: #{tpu_custom_call.1} parent=5 // pred_fallthru
        _
    $region6: #{tpu_custom_call.1} parent=1 // loop_footer
      %s24 = sadd.s32 1, %s20
    $region7: #{tpu_custom_call.1} parent=1 // loop_footer_branch
      %19 = sbr.rel target = $region3
    $region8: #{tpu_custom_call.1} parent=1 // loop_exit
      _
    %1247 = vsyncpa [#allocation4], 1
    %s1248 = scalar_lea.sflag [#allocation4], 1
    %1249 = vsyncpa %s1248, 1
    %1250 = vsyncpa [#allocation7], 1
    %1251 = vsyncpa [#allocation5], 1
    %s1252 = scalar_lea.sflag [#allocation5], 1
    %1253 = vsyncpa %s1252, 1

</llo_original>
